<compile_context>
chip_gen: v7x
topology: tpu7x:2x2x1
jax: 0.10.0
libtpu: 0.0.40
codegen_flags: <defaults>
</compile_context>

<pallas_src>
import math
import jax
import jax.numpy as jnp
from jax.experimental import pallas as pl
from jax.experimental.pallas import tpu as pltpu

# ----------------------------- hyper-params ---------------------------------
B = 2          # batch
L = 8          # sequence length
D_MODEL = 16
D_INNER = 32
DT_RANK = 4
D_CONV = 4
D_STATE = 8
EPS = 1e-5
PAD = D_CONV - 1
# TODO(synk): nn.Dropout omitted (inference-mode identity); training dropout
# would require pltpu.prng_seed / prng_random_bits inside the kernel.

# Row layout of the packed small-parameter tensor (all rows are D_INNER wide).
_ROW_CONVW = 0                         # rows [0, D_CONV)          : conv weight
_ROW_CONVB = D_CONV                    # row  D_CONV               : conv bias
_ROW_DTB = D_CONV + 1                  # row  D_CONV+1             : dt_proj bias
_ROW_D = D_CONV + 2                    # row  D_CONV+2             : D skip
_ROW_ALOG = D_CONV + 3                 # rows [.., +D_STATE)       : A_log^T
_ROW_WDT = D_CONV + 3 + D_STATE        # rows [.., +DT_RANK)       : dt_proj weight^T
_PACK_ROWS = D_CONV + 3 + D_STATE + DT_RANK


# ------------------------------- kernel -------------------------------------
def residual_block_kernel(x_ref, wnorm_ref, win_ref, wx_ref, wout_ref,
                          pack_ref, out_ref):
    # Single grid step: whole batch processed at once, matmul M = B*L.
    x = x_ref[...]                                          # [B*L, d_model] f32

    pack = pack_ref[...]                                    # [_PACK_ROWS, d_inner] f32
    conv_w = pack[_ROW_CONVW:_ROW_CONVW + D_CONV, :]        # [d_conv, d_inner]
    conv_b = pack[_ROW_CONVB:_ROW_CONVB + 1, :]             # [1, d_inner]
    dt_b = pack[_ROW_DTB:_ROW_DTB + 1, :]                   # [1, d_inner]
    d_skip = pack[_ROW_D:_ROW_D + 1, :]                     # [1, d_inner]
    a_log_t = pack[_ROW_ALOG:_ROW_ALOG + D_STATE, :]        # [d_state, d_inner]
    w_dt = pack[_ROW_WDT:_ROW_WDT + DT_RANK, :]             # [dt_rank, d_inner]

    # ---- RMSNorm (f32) -----------------------------------------------------
    ms = jnp.mean(x * x, axis=-1, keepdims=True)            # [B*L, 1]
    xn = x * jax.lax.rsqrt(ms + EPS) * wnorm_ref[...]       # [B*L, d_model]

    # ---- in_proj (no bias): bf16 MXU operands, f32 accumulation -------------
    xr = jnp.dot(xn.astype(jnp.bfloat16), win_ref[...],
                 preferred_element_type=jnp.float32)        # [B*L, 2*d_inner]
    xi = xr[:, :D_INNER]                                    # [B*L, d_inner]
    res = xr[:, D_INNER:]                                   # [B*L, d_inner]

    # ---- causal depthwise conv1d: pltpu.roll + zero mask (no VMEM buffer) ---
    # out[b, t] = sum_k w[k] * xi[b, t - (PAD-k)], zero for t < PAD-k.
    # Rolling the full [B*L, d_inner] slab by s mixes batches only for local
    # t < s, which is exactly the region the mask zeroes.
    row = jax.lax.broadcasted_iota(jnp.int32, (B * L, D_INNER), 0)
    local_t = row % L
    acc = jnp.zeros((B * L, D_INNER), jnp.float32)
    for k in range(D_CONV):
        s = PAD - k
        if s == 0:
            xk = xi
        else:
            xk = jnp.where(local_t >= s, pltpu.roll(xi, shift=s, axis=0), 0.0)
        acc = acc + xk * conv_w[k:k + 1, :]
    xc = acc + conv_b                                       # [B*L, d_inner]
    xc = xc * jax.nn.sigmoid(xc)                            # SiLU -> u (f32)

    # ---- x_proj (no bias) -> delta_r, B, C: bf16 MXU, f32 accumulation ------
    xdbl = jnp.dot(xc.astype(jnp.bfloat16), wx_ref[...],
                   preferred_element_type=jnp.float32)      # [B*L, dt_rank+2*d_state]
    dlt_r = xdbl[:, :DT_RANK]                               # [B*L, dt_rank]
    Bm = xdbl[:, DT_RANK:DT_RANK + D_STATE]                 # [B*L, d_state]
    Cm = xdbl[:, DT_RANK + D_STATE:DT_RANK + 2 * D_STATE]   # [B*L, d_state]

    # ---- dt_proj as DT_RANK VPU lane-broadcast FMAs (no K=4 MXU matmul) -----
    delta = jnp.zeros((B * L, D_INNER), jnp.float32) + dt_b
    for r in range(DT_RANK):
        delta = delta + dlt_r[:, r:r + 1] * w_dt[r:r + 1, :]

    # Stable softplus: max(x,0) + log1p(exp(-|x|)).  log1p computed to full
    # precision from always-lowering ops: log1p(e) = log(u) * e / (u-1), u=1+e.
    e = jnp.exp(-jnp.abs(delta))
    u = 1.0 + e
    log1p_e = jnp.where(u == 1.0, e, jnp.log(u) * (e / (u - 1.0)))
    delta = jnp.maximum(delta, 0.0) + log1p_e

    # ---- selective scan ------------------------------------------------------
    # Lane-dense slabs [L, B*d_state*d_inner]; lane index (b*N + n)*D + d.
    # One exp for all of deltaA; no transposes inside the time loop.
    A_T = -jnp.exp(a_log_t)                                 # [d_state, d_inner]
    v = delta * xc                                          # delta * u
    dA_cols, dBu_cols = [], []
    for b in range(B):
        rows = slice(b * L, (b + 1) * L)
        d_b = delta[rows, :]                                # [L, d_inner]
        v_b = v[rows, :]
        for n in range(D_STATE):
            dA_cols.append(d_b * A_T[n:n + 1, :])           # sublane bcast
            dBu_cols.append(v_b * Bm[rows, n:n + 1])        # lane bcast
    dA = jnp.exp(jnp.concatenate(dA_cols, axis=-1))         # [L, B*N*D]
    dBu = jnp.concatenate(dBu_cols, axis=-1)                # [L, B*N*D]

    # Recurrence: pure elementwise FMA per step; history kept in vregs
    # ([8, 512] f32 = 4 vregs), no VMEM store/reload on the critical path.
    state = jnp.zeros((1, B * D_STATE * D_INNER), jnp.float32)
    states = []
    for t in range(L):                                      # static unroll (L=8)
        state = dA[t:t + 1, :] * state + dBu[t:t + 1, :]
        states.append(state)
    H = jnp.concatenate(states, axis=0)                     # [L, B*N*D]

    # Contraction with C, vectorized over time (outside the loop).
    y_parts = []
    for b in range(B):
        rows = slice(b * L, (b + 1) * L)
        y_b = jnp.zeros((L, D_INNER), jnp.float32)
        for n in range(D_STATE):
            c0 = (b * D_STATE + n) * D_INNER
            y_b = y_b + H[:, c0:c0 + D_INNER] * Cm[rows, n:n + 1]
        y_parts.append(y_b)
    y = jnp.concatenate(y_parts, axis=0)                    # [B*L, d_inner]

    y = y + xc * d_skip                                     # + u * D
    y = y * (res * jax.nn.sigmoid(res))                     # gate with SiLU(res)

    # ---- out_proj (bf16 MXU, f32 acc) + residual add -------------------------
    out = jnp.dot(y.astype(jnp.bfloat16), wout_ref[...],
                  preferred_element_type=jnp.float32)
    out_ref[...] = (out + x).astype(out_ref.dtype)


# ------------------------------ wrapper --------------------------------------
def residual_block(x, params):
    b, l, d_model = x.shape
    # Pack the small per-channel parameters into one operand (fewer DMAs).
    pack = jnp.concatenate(
        [params["conv_w_t"], params["conv_b"], params["dt_b"],
         params["D"], params["A_log_t"], params["w_dt_t"]],
        axis=0).astype(jnp.float32)
    assert pack.shape == (_PACK_ROWS, D_INNER)

    args = (x.reshape(b * l, d_model),                 # fold B*L into matmul M
            params["w_norm"],
            params["w_in_t"].astype(jnp.bfloat16),     # bf16 weights: half the DMA bytes
            params["w_x_t"].astype(jnp.bfloat16),
            params["w_out_t"].astype(jnp.bfloat16),
            pack)

    def vmem():
        return pl.BlockSpec(memory_space=pltpu.MemorySpace.VMEM)

    out = pl.pallas_call(
        residual_block_kernel,
        out_shape=jax.ShapeDtypeStruct((b * l, d_model), x.dtype),
        in_specs=[vmem() for _ in args],
        out_specs=vmem(),
    )(*args)
    return out.reshape(b, l, d_model)


# ------------------------- pure-JAX reference --------------------------------
# Mirrors the kernel's bf16-at-the-MXU-boundary numerics so the check is tight.
def reference_forward(x, p):
    bf = jnp.bfloat16
    w_in = p["w_in_t"].astype(bf)
    w_x = p["w_x_t"].astype(bf)
    w_out = p["w_out_t"].astype(bf)

    xn = x * jax.lax.rsqrt(jnp.mean(x * x, -1, keepdims=True) + EPS) * p["w_norm"][0]
    xr = jnp.dot(xn.astype(bf), w_in, preferred_element_type=jnp.float32)
    xi, res = xr[..., :D_INNER], xr[..., D_INNER:]

    pad = D_CONV - 1
    xpad = jnp.pad(xi, ((0, 0), (pad, 0), (0, 0)))
    xc = sum(xpad[:, k:k + L, :] * p["conv_w_t"][k] for k in range(D_CONV))
    xc = xc + p["conv_b"][0]
    xc = jax.nn.silu(xc)

    xdbl = jnp.dot(xc.astype(bf), w_x, preferred_element_type=jnp.float32)
    dlt = xdbl[..., :DT_RANK]
    Bm = xdbl[..., DT_RANK:DT_RANK + D_STATE]
    Cm = xdbl[..., DT_RANK + D_STATE:]
    delta = jax.nn.softplus(dlt @ p["w_dt_t"] + p["dt_b"][0])

    A = -jnp.exp(p["A_log_t"]).T                             # [d_inner, d_state]
    dA = jnp.exp(jnp.einsum("bld,dn->bldn", delta, A))
    dBu = jnp.einsum("bld,bln,bld->bldn", delta, Bm, xc)

    def step(state, inp):
        dA_t, dBu_t, C_t = inp
        state = dA_t * state + dBu_t
        y_t = jnp.einsum("bdn,bn->bd", state, C_t)
        return state, y_t

    state0 = jnp.zeros((x.shape[0], D_INNER, D_STATE), jnp.float32)
    _, ys = jax.lax.scan(
        step, state0,
        (dA.transpose(1, 0, 2, 3), dBu.transpose(1, 0, 2, 3), Cm.transpose(1, 0, 2)))
    y = ys.transpose(1, 0, 2)
    y = y + xc * p["D"][0]
    y = y * jax.nn.silu(res)
    return jnp.dot(y.astype(bf), w_out, preferred_element_type=jnp.float32) + x


# --------------------------------- main ---------------------------------------
if __name__ == "__main__":
    key = jax.random.PRNGKey(0)
    ks = jax.random.split(key, 8)

    def lin_init(k, fan_in, shape):
        bound = 1.0 / math.sqrt(fan_in)
        return jax.random.uniform(k, shape, jnp.float32, -bound, bound)

    params = {
        "w_norm": jnp.ones((1, D_MODEL), jnp.float32),
        "w_in_t": lin_init(ks[0], D_MODEL, (D_MODEL, 2 * D_INNER)),
        "conv_w_t": lin_init(ks[1], D_CONV, (D_CONV, D_INNER)),
        "conv_b": lin_init(ks[2], D_CONV, (1, D_INNER)),
        "w_x_t": lin_init(ks[3], D_INNER, (D_INNER, DT_RANK + 2 * D_STATE)),
        "w_dt_t": lin_init(ks[4], DT_RANK, (DT_RANK, D_INNER)),
        "dt_b": lin_init(ks[5], DT_RANK, (1, D_INNER)),
        "A_log_t": jnp.broadcast_to(
            jnp.log(jnp.arange(1, D_STATE + 1, dtype=jnp.float32))[:, None],
            (D_STATE, D_INNER)),
        "D": jnp.ones((1, D_INNER), jnp.float32),
        "w_out_t": lin_init(ks[6], D_INNER, (D_INNER, D_MODEL)),
    }

    x = jax.random.normal(ks[7], (B, L, D_MODEL), jnp.float32)

    out = residual_block(x, params)
    out = jax.block_until_ready(out)

    ref = reference_forward(x, params)
    assert out.shape == (B, L, D_MODEL)
    # Tolerance covers rare one-ulp bf16 rounding divergences of intermediates
    # between the MXU and the XLA reference path; real bugs are O(0.1-1).
    assert jnp.allclose(out, ref, rtol=1e-2, atol=1e-2), (
        f"max abs diff {jnp.max(jnp.abs(out - ref))}")

    print("KERNEL_OK")
</pallas_src>

<mosaic_0001>
module attributes {stable_mosaic.version = 11 : i64} {
  func.func @residual_block_kernel(%arg0: memref<16x16xf32, #tpu.memory_space<vmem>>, %arg1: memref<1x16xf32, #tpu.memory_space<vmem>>, %arg2: memref<16x64xbf16, #tpu.memory_space<vmem>>, %arg3: memref<32x20xbf16, #tpu.memory_space<vmem>>, %arg4: memref<32x16xbf16, #tpu.memory_space<vmem>>, %arg5: memref<19x32xf32, #tpu.memory_space<vmem>>, %arg6: memref<16x16xf32, #tpu.memory_space<vmem>>) attributes {dimension_semantics = [], scalar_prefetch = 0 : i64, scratch_operands = 0 : i64, tpu.core_type = #tpu.core_type<tc>} {
    %c0 = arith.constant 0 : index
    %c0_0 = arith.constant 0 : index
    %0 = vector.load %arg0[%c0, %c0_0] : memref<16x16xf32, #tpu.memory_space<vmem>>, vector<16x16xf32>
    %c0_1 = arith.constant 0 : index
    %c0_2 = arith.constant 0 : index
    %1 = vector.load %arg5[%c0_1, %c0_2] : memref<19x32xf32, #tpu.memory_space<vmem>>, vector<19x32xf32>
    %2 = vector.extract_strided_slice %1 {offsets = [0, 0], sizes = [4, 32], strides = [1, 1]} : vector<19x32xf32> to vector<4x32xf32>
    %3 = vector.extract_strided_slice %1 {offsets = [4, 0], sizes = [1, 32], strides = [1, 1]} : vector<19x32xf32> to vector<1x32xf32>
    %4 = vector.extract_strided_slice %1 {offsets = [5, 0], sizes = [1, 32], strides = [1, 1]} : vector<19x32xf32> to vector<1x32xf32>
    %5 = vector.extract_strided_slice %1 {offsets = [6, 0], sizes = [1, 32], strides = [1, 1]} : vector<19x32xf32> to vector<1x32xf32>
    %6 = vector.extract_strided_slice %1 {offsets = [7, 0], sizes = [8, 32], strides = [1, 1]} : vector<19x32xf32> to vector<8x32xf32>
    %7 = vector.extract_strided_slice %1 {offsets = [15, 0], sizes = [4, 32], strides = [1, 1]} : vector<19x32xf32> to vector<4x32xf32>
    %8 = arith.mulf %0, %0 : vector<16x16xf32>
    %cst = arith.constant dense<0.000000e+00> : vector<16xf32>
    %9 = vector.multi_reduction <add>, %8, %cst [1] : vector<16x16xf32> to vector<16xf32>
    %10 = vector.shape_cast %9 : vector<16xf32> to vector<16x1xf32>
    %cst_3 = arith.constant 1.600000e+01 : f32
    %11 = vector.broadcast %cst_3 : f32 to vector<16x1xf32>
    %12 = arith.divf %10, %11 : vector<16x1xf32>
    %cst_4 = arith.constant 9.99999974E-6 : f32
    %13 = vector.broadcast %cst_4 : f32 to vector<16x1xf32>
    %14 = arith.addf %12, %13 : vector<16x1xf32>
    %15 = math.rsqrt %14 : vector<16x1xf32>
    %16 = vector.broadcast %15 : vector<16x1xf32> to vector<16x16xf32>
    %17 = arith.mulf %0, %16 : vector<16x16xf32>
    %c0_5 = arith.constant 0 : index
    %c0_6 = arith.constant 0 : index
    %18 = vector.load %arg1[%c0_5, %c0_6] : memref<1x16xf32, #tpu.memory_space<vmem>>, vector<1x16xf32>
    %19 = vector.broadcast %18 : vector<1x16xf32> to vector<16x16xf32>
    %20 = arith.mulf %17, %19 : vector<16x16xf32>
    %21 = arith.truncf %20 : vector<16x16xf32> to vector<16x16xbf16>
    %c0_7 = arith.constant 0 : index
    %c0_8 = arith.constant 0 : index
    %22 = vector.load %arg2[%c0_7, %c0_8] : memref<16x64xbf16, #tpu.memory_space<vmem>>, vector<16x64xbf16>
    %cst_9 = arith.constant dense<0.000000e+00> : vector<16x64xf32>
    %23 = tpu.matmul %21, %22, %cst_9 {dimension_numbers = #tpu.dot_dimension_numbers<[1], [0], [0], [1], [0, 0, 1, 1], [], []>} : vector<16x16xbf16>, vector<16x64xbf16>, vector<16x64xf32> -> vector<16x64xf32>
    %24 = vector.extract_strided_slice %23 {offsets = [0, 0], sizes = [16, 32], strides = [1, 1]} : vector<16x64xf32> to vector<16x32xf32>
    %25 = vector.extract_strided_slice %23 {offsets = [0, 32], sizes = [16, 32], strides = [1, 1]} : vector<16x64xf32> to vector<16x32xf32>
    %26 = tpu.iota {dimensions = array<i32: 0>} : vector<16x32xi32>
    %c8_i32 = arith.constant 8 : i32
    %c0_i32 = arith.constant 0 : i32
    %27 = arith.cmpi eq, %c8_i32, %c0_i32 : i32
    %c1_i32 = arith.constant 1 : i32
    %28 = arith.select %27, %c1_i32, %c8_i32 : i32
    %29 = vector.broadcast %28 : i32 to vector<16x32xi32>
    %30 = arith.remsi %26, %29 : vector<16x32xi32>
    %c0_i32_10 = arith.constant 0 : i32
    %31 = vector.broadcast %c0_i32_10 : i32 to vector<16x32xi32>
    %32 = arith.cmpi ne, %30, %31 : vector<16x32xi32>
    %c0_i32_11 = arith.constant 0 : i32
    %33 = vector.broadcast %c0_i32_11 : i32 to vector<16x32xi32>
    %34 = arith.cmpi slt, %30, %33 : vector<16x32xi32>
    %c0_i32_12 = arith.constant 0 : i32
    %35 = arith.cmpi slt, %28, %c0_i32_12 : i32
    %36 = vector.broadcast %35 : i1 to vector<16x32xi1>
    %37 = vector.broadcast %36 : vector<16x32xi1> to vector<16x32xi1>
    %38 = arith.xori %34, %37 : vector<16x32xi1>
    %39 = arith.andi %38, %32 : vector<16x32xi1>
    %40 = vector.broadcast %28 : i32 to vector<16x32xi32>
    %41 = arith.addi %30, %40 : vector<16x32xi32>
    %42 = arith.select %39, %41, %30 : vector<16x32xi1>, vector<16x32xi32>
    %cst_13 = arith.constant 0.000000e+00 : f32
    %43 = vector.broadcast %cst_13 : f32 to vector<16x32xf32>
    %c3_i32 = arith.constant 3 : i32
    %44 = vector.broadcast %c3_i32 : i32 to vector<16x32xi32>
    %45 = arith.cmpi sge, %42, %44 : vector<16x32xi32>
    %c3_i32_14 = arith.constant 3 : i32
    %46 = tpu.dynamic_rotate %24 by %c3_i32_14 dim 0 : vector<16x32xf32>, i32 -> vector<16x32xf32>
    %cst_15 = arith.constant 0.000000e+00 : f32
    %47 = vector.broadcast %cst_15 : f32 to vector<16x32xf32>
    %48 = arith.select %45, %46, %47 : vector<16x32xi1>, vector<16x32xf32>
    %49 = vector.extract_strided_slice %2 {offsets = [0, 0], sizes = [1, 32], strides = [1, 1]} : vector<4x32xf32> to vector<1x32xf32>
    %50 = vector.broadcast %49 : vector<1x32xf32> to vector<16x32xf32>
    %51 = arith.mulf %48, %50 : vector<16x32xf32>
    %52 = arith.addf %43, %51 : vector<16x32xf32>
    %c2_i32 = arith.constant 2 : i32
    %53 = vector.broadcast %c2_i32 : i32 to vector<16x32xi32>
    %54 = arith.cmpi sge, %42, %53 : vector<16x32xi32>
    %c2_i32_16 = arith.constant 2 : i32
    %55 = tpu.dynamic_rotate %24 by %c2_i32_16 dim 0 : vector<16x32xf32>, i32 -> vector<16x32xf32>
    %cst_17 = arith.constant 0.000000e+00 : f32
    %56 = vector.broadcast %cst_17 : f32 to vector<16x32xf32>
    %57 = arith.select %54, %55, %56 : vector<16x32xi1>, vector<16x32xf32>
    %58 = vector.extract_strided_slice %2 {offsets = [1, 0], sizes = [1, 32], strides = [1, 1]} : vector<4x32xf32> to vector<1x32xf32>
    %59 = vector.broadcast %58 : vector<1x32xf32> to vector<16x32xf32>
    %60 = arith.mulf %57, %59 : vector<16x32xf32>
    %61 = arith.addf %52, %60 : vector<16x32xf32>
    %c1_i32_18 = arith.constant 1 : i32
    %62 = vector.broadcast %c1_i32_18 : i32 to vector<16x32xi32>
    %63 = arith.cmpi sge, %42, %62 : vector<16x32xi32>
    %c1_i32_19 = arith.constant 1 : i32
    %64 = tpu.dynamic_rotate %24 by %c1_i32_19 dim 0 : vector<16x32xf32>, i32 -> vector<16x32xf32>
    %cst_20 = arith.constant 0.000000e+00 : f32
    %65 = vector.broadcast %cst_20 : f32 to vector<16x32xf32>
    %66 = arith.select %63, %64, %65 : vector<16x32xi1>, vector<16x32xf32>
    %67 = vector.extract_strided_slice %2 {offsets = [2, 0], sizes = [1, 32], strides = [1, 1]} : vector<4x32xf32> to vector<1x32xf32>
    %68 = vector.broadcast %67 : vector<1x32xf32> to vector<16x32xf32>
    %69 = arith.mulf %66, %68 : vector<16x32xf32>
    %70 = arith.addf %61, %69 : vector<16x32xf32>
    %71 = vector.extract_strided_slice %2 {offsets = [3, 0], sizes = [1, 32], strides = [1, 1]} : vector<4x32xf32> to vector<1x32xf32>
    %72 = vector.broadcast %71 : vector<1x32xf32> to vector<16x32xf32>
    %73 = arith.mulf %24, %72 : vector<16x32xf32>
    %74 = arith.addf %70, %73 : vector<16x32xf32>
    %75 = vector.broadcast %3 : vector<1x32xf32> to vector<16x32xf32>
    %76 = arith.addf %74, %75 : vector<16x32xf32>
    %77 = arith.negf %76 : vector<16x32xf32>
    %78 = math.exp %77 : vector<16x32xf32>
    %cst_21 = arith.constant 1.000000e+00 : f32
    %79 = vector.broadcast %cst_21 : f32 to vector<16x32xf32>
    %80 = arith.addf %79, %78 : vector<16x32xf32>
    %81 = arith.divf %79, %80 : vector<16x32xf32>
    %82 = arith.mulf %76, %81 : vector<16x32xf32>
    %83 = arith.truncf %82 : vector<16x32xf32> to vector<16x32xbf16>
    %c0_22 = arith.constant 0 : index
    %c0_23 = arith.constant 0 : index
    %84 = vector.load %arg3[%c0_22, %c0_23] : memref<32x20xbf16, #tpu.memory_space<vmem>>, vector<32x20xbf16>
    %cst_24 = arith.constant dense<0.000000e+00> : vector<16x20xf32>
    %85 = tpu.matmul %83, %84, %cst_24 {dimension_numbers = #tpu.dot_dimension_numbers<[1], [0], [0], [1], [0, 0, 1, 1], [], []>} : vector<16x32xbf16>, vector<32x20xbf16>, vector<16x20xf32> -> vector<16x20xf32>
    %86 = vector.extract_strided_slice %85 {offsets = [0, 0], sizes = [16, 4], strides = [1, 1]} : vector<16x20xf32> to vector<16x4xf32>
    %87 = vector.extract_strided_slice %85 {offsets = [0, 4], sizes = [16, 8], strides = [1, 1]} : vector<16x20xf32> to vector<16x8xf32>
    %88 = vector.extract_strided_slice %85 {offsets = [0, 12], sizes = [16, 8], strides = [1, 1]} : vector<16x20xf32> to vector<16x8xf32>
    %cst_25 = arith.constant 0.000000e+00 : f32
    %89 = vector.broadcast %cst_25 : f32 to vector<16x32xf32>
    %90 = vector.broadcast %4 : vector<1x32xf32> to vector<16x32xf32>
    %91 = arith.addf %89, %90 : vector<16x32xf32>
    %92 = vector.extract_strided_slice %86 {offsets = [0, 0], sizes = [16, 1], strides = [1, 1]} : vector<16x4xf32> to vector<16x1xf32>
    %93 = vector.extract_strided_slice %7 {offsets = [0, 0], sizes = [1, 32], strides = [1, 1]} : vector<4x32xf32> to vector<1x32xf32>
    %94 = vector.broadcast %92 : vector<16x1xf32> to vector<16x32xf32>
    %95 = vector.broadcast %93 : vector<1x32xf32> to vector<16x32xf32>
    %96 = arith.mulf %94, %95 : vector<16x32xf32>
    %97 = arith.addf %91, %96 : vector<16x32xf32>
    %98 = vector.extract_strided_slice %86 {offsets = [0, 1], sizes = [16, 1], strides = [1, 1]} : vector<16x4xf32> to vector<16x1xf32>
    %99 = vector.extract_strided_slice %7 {offsets = [1, 0], sizes = [1, 32], strides = [1, 1]} : vector<4x32xf32> to vector<1x32xf32>
    %100 = vector.broadcast %98 : vector<16x1xf32> to vector<16x32xf32>
    %101 = vector.broadcast %99 : vector<1x32xf32> to vector<16x32xf32>
    %102 = arith.mulf %100, %101 : vector<16x32xf32>
    %103 = arith.addf %97, %102 : vector<16x32xf32>
    %104 = vector.extract_strided_slice %86 {offsets = [0, 2], sizes = [16, 1], strides = [1, 1]} : vector<16x4xf32> to vector<16x1xf32>
    %105 = vector.extract_strided_slice %7 {offsets = [2, 0], sizes = [1, 32], strides = [1, 1]} : vector<4x32xf32> to vector<1x32xf32>
    %106 = vector.broadcast %104 : vector<16x1xf32> to vector<16x32xf32>
    %107 = vector.broadcast %105 : vector<1x32xf32> to vector<16x32xf32>
    %108 = arith.mulf %106, %107 : vector<16x32xf32>
    %109 = arith.addf %103, %108 : vector<16x32xf32>
    %110 = vector.extract_strided_slice %86 {offsets = [0, 3], sizes = [16, 1], strides = [1, 1]} : vector<16x4xf32> to vector<16x1xf32>
    %111 = vector.extract_strided_slice %7 {offsets = [3, 0], sizes = [1, 32], strides = [1, 1]} : vector<4x32xf32> to vector<1x32xf32>
    %112 = vector.broadcast %110 : vector<16x1xf32> to vector<16x32xf32>
    %113 = vector.broadcast %111 : vector<1x32xf32> to vector<16x32xf32>
    %114 = arith.mulf %112, %113 : vector<16x32xf32>
    %115 = arith.addf %109, %114 : vector<16x32xf32>
    %116 = math.absf %115 : vector<16x32xf32>
    %cst_26 = arith.constant 0.000000e+00 : f32
    %117 = vector.broadcast %cst_26 : f32 to vector<16x32xf32>
    %118 = arith.subf %117, %116 : vector<16x32xf32>
    %119 = math.exp %118 : vector<16x32xf32>
    %cst_27 = arith.constant 1.000000e+00 : f32
    %120 = vector.broadcast %cst_27 : f32 to vector<16x32xf32>
    %121 = arith.addf %120, %119 : vector<16x32xf32>
    %cst_28 = arith.constant 1.000000e+00 : f32
    %122 = vector.broadcast %cst_28 : f32 to vector<16x32xf32>
    %123 = arith.cmpf oeq, %121, %122 : vector<16x32xf32>
    %124 = math.log %121 : vector<16x32xf32>
    %cst_29 = arith.constant 1.000000e+00 : f32
    %125 = vector.broadcast %cst_29 : f32 to vector<16x32xf32>
    %126 = arith.subf %121, %125 : vector<16x32xf32>
    %127 = arith.divf %119, %126 : vector<16x32xf32>
    %128 = arith.mulf %124, %127 : vector<16x32xf32>
    %129 = arith.select %123, %119, %128 : vector<16x32xi1>, vector<16x32xf32>
    %cst_30 = arith.constant 0.000000e+00 : f32
    %130 = vector.broadcast %cst_30 : f32 to vector<16x32xf32>
    %131 = arith.maximumf %115, %130 : vector<16x32xf32>
    %132 = arith.addf %131, %129 : vector<16x32xf32>
    %133 = math.exp %6 : vector<8x32xf32>
    %cst_31 = arith.constant 0.000000e+00 : f32
    %134 = vector.broadcast %cst_31 : f32 to vector<8x32xf32>
    %135 = arith.subf %134, %133 : vector<8x32xf32>
    %136 = arith.mulf %132, %82 : vector<16x32xf32>
    %137 = vector.extract_strided_slice %132 {offsets = [0, 0], sizes = [8, 32], strides = [1, 1]} : vector<16x32xf32> to vector<8x32xf32>
    %138 = vector.extract_strided_slice %136 {offsets = [0, 0], sizes = [8, 32], strides = [1, 1]} : vector<16x32xf32> to vector<8x32xf32>
    %139 = vector.extract_strided_slice %135 {offsets = [0, 0], sizes = [1, 32], strides = [1, 1]} : vector<8x32xf32> to vector<1x32xf32>
    %140 = vector.broadcast %139 : vector<1x32xf32> to vector<8x32xf32>
    %141 = arith.mulf %137, %140 : vector<8x32xf32>
    %142 = vector.extract_strided_slice %87 {offsets = [0, 0], sizes = [8, 1], strides = [1, 1]} : vector<16x8xf32> to vector<8x1xf32>
    %143 = vector.broadcast %142 : vector<8x1xf32> to vector<8x32xf32>
    %144 = arith.mulf %138, %143 : vector<8x32xf32>
    %145 = vector.extract_strided_slice %135 {offsets = [1, 0], sizes = [1, 32], strides = [1, 1]} : vector<8x32xf32> to vector<1x32xf32>
    %146 = vector.broadcast %145 : vector<1x32xf32> to vector<8x32xf32>
    %147 = arith.mulf %137, %146 : vector<8x32xf32>
    %148 = vector.extract_strided_slice %87 {offsets = [0, 1], sizes = [8, 1], strides = [1, 1]} : vector<16x8xf32> to vector<8x1xf32>
    %149 = vector.broadcast %148 : vector<8x1xf32> to vector<8x32xf32>
    %150 = arith.mulf %138, %149 : vector<8x32xf32>
    %151 = vector.extract_strided_slice %135 {offsets = [2, 0], sizes = [1, 32], strides = [1, 1]} : vector<8x32xf32> to vector<1x32xf32>
    %152 = vector.broadcast %151 : vector<1x32xf32> to vector<8x32xf32>
    %153 = arith.mulf %137, %152 : vector<8x32xf32>
    %154 = vector.extract_strided_slice %87 {offsets = [0, 2], sizes = [8, 1], strides = [1, 1]} : vector<16x8xf32> to vector<8x1xf32>
    %155 = vector.broadcast %154 : vector<8x1xf32> to vector<8x32xf32>
    %156 = arith.mulf %138, %155 : vector<8x32xf32>
    %157 = vector.extract_strided_slice %135 {offsets = [3, 0], sizes = [1, 32], strides = [1, 1]} : vector<8x32xf32> to vector<1x32xf32>
    %158 = vector.broadcast %157 : vector<1x32xf32> to vector<8x32xf32>
    %159 = arith.mulf %137, %158 : vector<8x32xf32>
    %160 = vector.extract_strided_slice %87 {offsets = [0, 3], sizes = [8, 1], strides = [1, 1]} : vector<16x8xf32> to vector<8x1xf32>
    %161 = vector.broadcast %160 : vector<8x1xf32> to vector<8x32xf32>
    %162 = arith.mulf %138, %161 : vector<8x32xf32>
    %163 = vector.extract_strided_slice %135 {offsets = [4, 0], sizes = [1, 32], strides = [1, 1]} : vector<8x32xf32> to vector<1x32xf32>
    %164 = vector.broadcast %163 : vector<1x32xf32> to vector<8x32xf32>
    %165 = arith.mulf %137, %164 : vector<8x32xf32>
    %166 = vector.extract_strided_slice %87 {offsets = [0, 4], sizes = [8, 1], strides = [1, 1]} : vector<16x8xf32> to vector<8x1xf32>
    %167 = vector.broadcast %166 : vector<8x1xf32> to vector<8x32xf32>
    %168 = arith.mulf %138, %167 : vector<8x32xf32>
    %169 = vector.extract_strided_slice %135 {offsets = [5, 0], sizes = [1, 32], strides = [1, 1]} : vector<8x32xf32> to vector<1x32xf32>
    %170 = vector.broadcast %169 : vector<1x32xf32> to vector<8x32xf32>
    %171 = arith.mulf %137, %170 : vector<8x32xf32>
    %172 = vector.extract_strided_slice %87 {offsets = [0, 5], sizes = [8, 1], strides = [1, 1]} : vector<16x8xf32> to vector<8x1xf32>
    %173 = vector.broadcast %172 : vector<8x1xf32> to vector<8x32xf32>
    %174 = arith.mulf %138, %173 : vector<8x32xf32>
    %175 = vector.extract_strided_slice %135 {offsets = [6, 0], sizes = [1, 32], strides = [1, 1]} : vector<8x32xf32> to vector<1x32xf32>
    %176 = vector.broadcast %175 : vector<1x32xf32> to vector<8x32xf32>
    %177 = arith.mulf %137, %176 : vector<8x32xf32>
    %178 = vector.extract_strided_slice %87 {offsets = [0, 6], sizes = [8, 1], strides = [1, 1]} : vector<16x8xf32> to vector<8x1xf32>
    %179 = vector.broadcast %178 : vector<8x1xf32> to vector<8x32xf32>
    %180 = arith.mulf %138, %179 : vector<8x32xf32>
    %181 = vector.extract_strided_slice %135 {offsets = [7, 0], sizes = [1, 32], strides = [1, 1]} : vector<8x32xf32> to vector<1x32xf32>
    %182 = vector.broadcast %181 : vector<1x32xf32> to vector<8x32xf32>
    %183 = arith.mulf %137, %182 : vector<8x32xf32>
    %184 = vector.extract_strided_slice %87 {offsets = [0, 7], sizes = [8, 1], strides = [1, 1]} : vector<16x8xf32> to vector<8x1xf32>
    %185 = vector.broadcast %184 : vector<8x1xf32> to vector<8x32xf32>
    %186 = arith.mulf %138, %185 : vector<8x32xf32>
    %187 = vector.extract_strided_slice %132 {offsets = [8, 0], sizes = [8, 32], strides = [1, 1]} : vector<16x32xf32> to vector<8x32xf32>
    %188 = vector.extract_strided_slice %136 {offsets = [8, 0], sizes = [8, 32], strides = [1, 1]} : vector<16x32xf32> to vector<8x32xf32>
    %189 = vector.extract_strided_slice %135 {offsets = [0, 0], sizes = [1, 32], strides = [1, 1]} : vector<8x32xf32> to vector<1x32xf32>
    %190 = vector.broadcast %189 : vector<1x32xf32> to vector<8x32xf32>
    %191 = arith.mulf %187, %190 : vector<8x32xf32>
    %192 = vector.extract_strided_slice %87 {offsets = [8, 0], sizes = [8, 1], strides = [1, 1]} : vector<16x8xf32> to vector<8x1xf32>
    %193 = vector.broadcast %192 : vector<8x1xf32> to vector<8x32xf32>
    %194 = arith.mulf %188, %193 : vector<8x32xf32>
    %195 = vector.extract_strided_slice %135 {offsets = [1, 0], sizes = [1, 32], strides = [1, 1]} : vector<8x32xf32> to vector<1x32xf32>
    %196 = vector.broadcast %195 : vector<1x32xf32> to vector<8x32xf32>
    %197 = arith.mulf %187, %196 : vector<8x32xf32>
    %198 = vector.extract_strided_slice %87 {offsets = [8, 1], sizes = [8, 1], strides = [1, 1]} : vector<16x8xf32> to vector<8x1xf32>
    %199 = vector.broadcast %198 : vector<8x1xf32> to vector<8x32xf32>
    %200 = arith.mulf %188, %199 : vector<8x32xf32>
    %201 = vector.extract_strided_slice %135 {offsets = [2, 0], sizes = [1, 32], strides = [1, 1]} : vector<8x32xf32> to vector<1x32xf32>
    %202 = vector.broadcast %201 : vector<1x32xf32> to vector<8x32xf32>
    %203 = arith.mulf %187, %202 : vector<8x32xf32>
    %204 = vector.extract_strided_slice %87 {offsets = [8, 2], sizes = [8, 1], strides = [1, 1]} : vector<16x8xf32> to vector<8x1xf32>
    %205 = vector.broadcast %204 : vector<8x1xf32> to vector<8x32xf32>
    %206 = arith.mulf %188, %205 : vector<8x32xf32>
    %207 = vector.extract_strided_slice %135 {offsets = [3, 0], sizes = [1, 32], strides = [1, 1]} : vector<8x32xf32> to vector<1x32xf32>
    %208 = vector.broadcast %207 : vector<1x32xf32> to vector<8x32xf32>
    %209 = arith.mulf %187, %208 : vector<8x32xf32>
    %210 = vector.extract_strided_slice %87 {offsets = [8, 3], sizes = [8, 1], strides = [1, 1]} : vector<16x8xf32> to vector<8x1xf32>
    %211 = vector.broadcast %210 : vector<8x1xf32> to vector<8x32xf32>
    %212 = arith.mulf %188, %211 : vector<8x32xf32>
    %213 = vector.extract_strided_slice %135 {offsets = [4, 0], sizes = [1, 32], strides = [1, 1]} : vector<8x32xf32> to vector<1x32xf32>
    %214 = vector.broadcast %213 : vector<1x32xf32> to vector<8x32xf32>
    %215 = arith.mulf %187, %214 : vector<8x32xf32>
    %216 = vector.extract_strided_slice %87 {offsets = [8, 4], sizes = [8, 1], strides = [1, 1]} : vector<16x8xf32> to vector<8x1xf32>
    %217 = vector.broadcast %216 : vector<8x1xf32> to vector<8x32xf32>
    %218 = arith.mulf %188, %217 : vector<8x32xf32>
    %219 = vector.extract_strided_slice %135 {offsets = [5, 0], sizes = [1, 32], strides = [1, 1]} : vector<8x32xf32> to vector<1x32xf32>
    %220 = vector.broadcast %219 : vector<1x32xf32> to vector<8x32xf32>
    %221 = arith.mulf %187, %220 : vector<8x32xf32>
    %222 = vector.extract_strided_slice %87 {offsets = [8, 5], sizes = [8, 1], strides = [1, 1]} : vector<16x8xf32> to vector<8x1xf32>
    %223 = vector.broadcast %222 : vector<8x1xf32> to vector<8x32xf32>
    %224 = arith.mulf %188, %223 : vector<8x32xf32>
    %225 = vector.extract_strided_slice %135 {offsets = [6, 0], sizes = [1, 32], strides = [1, 1]} : vector<8x32xf32> to vector<1x32xf32>
    %226 = vector.broadcast %225 : vector<1x32xf32> to vector<8x32xf32>
    %227 = arith.mulf %187, %226 : vector<8x32xf32>
    %228 = vector.extract_strided_slice %87 {offsets = [8, 6], sizes = [8, 1], strides = [1, 1]} : vector<16x8xf32> to vector<8x1xf32>
    %229 = vector.broadcast %228 : vector<8x1xf32> to vector<8x32xf32>
    %230 = arith.mulf %188, %229 : vector<8x32xf32>
    %231 = vector.extract_strided_slice %135 {offsets = [7, 0], sizes = [1, 32], strides = [1, 1]} : vector<8x32xf32> to vector<1x32xf32>
    %232 = vector.broadcast %231 : vector<1x32xf32> to vector<8x32xf32>
    %233 = arith.mulf %187, %232 : vector<8x32xf32>
    %234 = vector.extract_strided_slice %87 {offsets = [8, 7], sizes = [8, 1], strides = [1, 1]} : vector<16x8xf32> to vector<8x1xf32>
    %235 = vector.broadcast %234 : vector<8x1xf32> to vector<8x32xf32>
    %236 = arith.mulf %188, %235 : vector<8x32xf32>
    %237 = tpu.concatenate %141, %147, %153, %159, %165, %171, %177, %183, %191, %197, %203, %209, %215, %221, %227, %233 in 1 : vector<8x32xf32>, vector<8x32xf32>, vector<8x32xf32>, vector<8x32xf32>, vector<8x32xf32>, vector<8x32xf32>, vector<8x32xf32>, vector<8x32xf32>, vector<8x32xf32>, vector<8x32xf32>, vector<8x32xf32>, vector<8x32xf32>, vector<8x32xf32>, vector<8x32xf32>, vector<8x32xf32>, vector<8x32xf32> -> vector<8x512xf32>
    %238 = math.exp %237 : vector<8x512xf32>
    %239 = tpu.concatenate %144, %150, %156, %162, %168, %174, %180, %186, %194, %200, %206, %212, %218, %224, %230, %236 in 1 : vector<8x32xf32>, vector<8x32xf32>, vector<8x32xf32>, vector<8x32xf32>, vector<8x32xf32>, vector<8x32xf32>, vector<8x32xf32>, vector<8x32xf32>, vector<8x32xf32>, vector<8x32xf32>, vector<8x32xf32>, vector<8x32xf32>, vector<8x32xf32>, vector<8x32xf32>, vector<8x32xf32>, vector<8x32xf32> -> vector<8x512xf32>
    %cst_32 = arith.constant 0.000000e+00 : f32
    %240 = vector.broadcast %cst_32 : f32 to vector<1x512xf32>
    %241 = vector.extract_strided_slice %238 {offsets = [0, 0], sizes = [1, 512], strides = [1, 1]} : vector<8x512xf32> to vector<1x512xf32>
    %242 = arith.mulf %241, %240 : vector<1x512xf32>
    %243 = vector.extract_strided_slice %239 {offsets = [0, 0], sizes = [1, 512], strides = [1, 1]} : vector<8x512xf32> to vector<1x512xf32>
    %244 = arith.addf %242, %243 : vector<1x512xf32>
    %245 = vector.extract_strided_slice %238 {offsets = [1, 0], sizes = [1, 512], strides = [1, 1]} : vector<8x512xf32> to vector<1x512xf32>
    %246 = arith.mulf %245, %244 : vector<1x512xf32>
    %247 = vector.extract_strided_slice %239 {offsets = [1, 0], sizes = [1, 512], strides = [1, 1]} : vector<8x512xf32> to vector<1x512xf32>
    %248 = arith.addf %246, %247 : vector<1x512xf32>
    %249 = vector.extract_strided_slice %238 {offsets = [2, 0], sizes = [1, 512], strides = [1, 1]} : vector<8x512xf32> to vector<1x512xf32>
    %250 = arith.mulf %249, %248 : vector<1x512xf32>
    %251 = vector.extract_strided_slice %239 {offsets = [2, 0], sizes = [1, 512], strides = [1, 1]} : vector<8x512xf32> to vector<1x512xf32>
    %252 = arith.addf %250, %251 : vector<1x512xf32>
    %253 = vector.extract_strided_slice %238 {offsets = [3, 0], sizes = [1, 512], strides = [1, 1]} : vector<8x512xf32> to vector<1x512xf32>
    %254 = arith.mulf %253, %252 : vector<1x512xf32>
    %255 = vector.extract_strided_slice %239 {offsets = [3, 0], sizes = [1, 512], strides = [1, 1]} : vector<8x512xf32> to vector<1x512xf32>
    %256 = arith.addf %254, %255 : vector<1x512xf32>
    %257 = vector.extract_strided_slice %238 {offsets = [4, 0], sizes = [1, 512], strides = [1, 1]} : vector<8x512xf32> to vector<1x512xf32>
    %258 = arith.mulf %257, %256 : vector<1x512xf32>
    %259 = vector.extract_strided_slice %239 {offsets = [4, 0], sizes = [1, 512], strides = [1, 1]} : vector<8x512xf32> to vector<1x512xf32>
    %260 = arith.addf %258, %259 : vector<1x512xf32>
    %261 = vector.extract_strided_slice %238 {offsets = [5, 0], sizes = [1, 512], strides = [1, 1]} : vector<8x512xf32> to vector<1x512xf32>
    %262 = arith.mulf %261, %260 : vector<1x512xf32>
    %263 = vector.extract_strided_slice %239 {offsets = [5, 0], sizes = [1, 512], strides = [1, 1]} : vector<8x512xf32> to vector<1x512xf32>
    %264 = arith.addf %262, %263 : vector<1x512xf32>
    %265 = vector.extract_strided_slice %238 {offsets = [6, 0], sizes = [1, 512], strides = [1, 1]} : vector<8x512xf32> to vector<1x512xf32>
    %266 = arith.mulf %265, %264 : vector<1x512xf32>
    %267 = vector.extract_strided_slice %239 {offsets = [6, 0], sizes = [1, 512], strides = [1, 1]} : vector<8x512xf32> to vector<1x512xf32>
    %268 = arith.addf %266, %267 : vector<1x512xf32>
    %269 = vector.extract_strided_slice %238 {offsets = [7, 0], sizes = [1, 512], strides = [1, 1]} : vector<8x512xf32> to vector<1x512xf32>
    %270 = arith.mulf %269, %268 : vector<1x512xf32>
    %271 = vector.extract_strided_slice %239 {offsets = [7, 0], sizes = [1, 512], strides = [1, 1]} : vector<8x512xf32> to vector<1x512xf32>
    %272 = arith.addf %270, %271 : vector<1x512xf32>
    %273 = tpu.concatenate %244, %248, %252, %256, %260, %264, %268, %272 in 0 : vector<1x512xf32>, vector<1x512xf32>, vector<1x512xf32>, vector<1x512xf32>, vector<1x512xf32>, vector<1x512xf32>, vector<1x512xf32>, vector<1x512xf32> -> vector<8x512xf32>
    %cst_33 = arith.constant 0.000000e+00 : f32
    %274 = vector.broadcast %cst_33 : f32 to vector<8x32xf32>
    %275 = vector.extract_strided_slice %273 {offsets = [0, 0], sizes = [8, 32], strides = [1, 1]} : vector<8x512xf32> to vector<8x32xf32>
    %276 = vector.extract_strided_slice %88 {offsets = [0, 0], sizes = [8, 1], strides = [1, 1]} : vector<16x8xf32> to vector<8x1xf32>
    %277 = vector.broadcast %276 : vector<8x1xf32> to vector<8x32xf32>
    %278 = arith.mulf %275, %277 : vector<8x32xf32>
    %279 = arith.addf %274, %278 : vector<8x32xf32>
    %280 = vector.extract_strided_slice %273 {offsets = [0, 32], sizes = [8, 32], strides = [1, 1]} : vector<8x512xf32> to vector<8x32xf32>
    %281 = vector.extract_strided_slice %88 {offsets = [0, 1], sizes = [8, 1], strides = [1, 1]} : vector<16x8xf32> to vector<8x1xf32>
    %282 = vector.broadcast %281 : vector<8x1xf32> to vector<8x32xf32>
    %283 = arith.mulf %280, %282 : vector<8x32xf32>
    %284 = arith.addf %279, %283 : vector<8x32xf32>
    %285 = vector.extract_strided_slice %273 {offsets = [0, 64], sizes = [8, 32], strides = [1, 1]} : vector<8x512xf32> to vector<8x32xf32>
    %286 = vector.extract_strided_slice %88 {offsets = [0, 2], sizes = [8, 1], strides = [1, 1]} : vector<16x8xf32> to vector<8x1xf32>
    %287 = vector.broadcast %286 : vector<8x1xf32> to vector<8x32xf32>
    %288 = arith.mulf %285, %287 : vector<8x32xf32>
    %289 = arith.addf %284, %288 : vector<8x32xf32>
    %290 = vector.extract_strided_slice %273 {offsets = [0, 96], sizes = [8, 32], strides = [1, 1]} : vector<8x512xf32> to vector<8x32xf32>
    %291 = vector.extract_strided_slice %88 {offsets = [0, 3], sizes = [8, 1], strides = [1, 1]} : vector<16x8xf32> to vector<8x1xf32>
    %292 = vector.broadcast %291 : vector<8x1xf32> to vector<8x32xf32>
    %293 = arith.mulf %290, %292 : vector<8x32xf32>
    %294 = arith.addf %289, %293 : vector<8x32xf32>
    %295 = vector.extract_strided_slice %273 {offsets = [0, 128], sizes = [8, 32], strides = [1, 1]} : vector<8x512xf32> to vector<8x32xf32>
    %296 = vector.extract_strided_slice %88 {offsets = [0, 4], sizes = [8, 1], strides = [1, 1]} : vector<16x8xf32> to vector<8x1xf32>
    %297 = vector.broadcast %296 : vector<8x1xf32> to vector<8x32xf32>
    %298 = arith.mulf %295, %297 : vector<8x32xf32>
    %299 = arith.addf %294, %298 : vector<8x32xf32>
    %300 = vector.extract_strided_slice %273 {offsets = [0, 160], sizes = [8, 32], strides = [1, 1]} : vector<8x512xf32> to vector<8x32xf32>
    %301 = vector.extract_strided_slice %88 {offsets = [0, 5], sizes = [8, 1], strides = [1, 1]} : vector<16x8xf32> to vector<8x1xf32>
    %302 = vector.broadcast %301 : vector<8x1xf32> to vector<8x32xf32>
    %303 = arith.mulf %300, %302 : vector<8x32xf32>
    %304 = arith.addf %299, %303 : vector<8x32xf32>
    %305 = vector.extract_strided_slice %273 {offsets = [0, 192], sizes = [8, 32], strides = [1, 1]} : vector<8x512xf32> to vector<8x32xf32>
    %306 = vector.extract_strided_slice %88 {offsets = [0, 6], sizes = [8, 1], strides = [1, 1]} : vector<16x8xf32> to vector<8x1xf32>
    %307 = vector.broadcast %306 : vector<8x1xf32> to vector<8x32xf32>
    %308 = arith.mulf %305, %307 : vector<8x32xf32>
    %309 = arith.addf %304, %308 : vector<8x32xf32>
    %310 = vector.extract_strided_slice %273 {offsets = [0, 224], sizes = [8, 32], strides = [1, 1]} : vector<8x512xf32> to vector<8x32xf32>
    %311 = vector.extract_strided_slice %88 {offsets = [0, 7], sizes = [8, 1], strides = [1, 1]} : vector<16x8xf32> to vector<8x1xf32>
    %312 = vector.broadcast %311 : vector<8x1xf32> to vector<8x32xf32>
    %313 = arith.mulf %310, %312 : vector<8x32xf32>
    %314 = arith.addf %309, %313 : vector<8x32xf32>
    %cst_34 = arith.constant 0.000000e+00 : f32
    %315 = vector.broadcast %cst_34 : f32 to vector<8x32xf32>
    %316 = vector.extract_strided_slice %273 {offsets = [0, 256], sizes = [8, 32], strides = [1, 1]} : vector<8x512xf32> to vector<8x32xf32>
    %317 = vector.extract_strided_slice %88 {offsets = [8, 0], sizes = [8, 1], strides = [1, 1]} : vector<16x8xf32> to vector<8x1xf32>
    %318 = vector.broadcast %317 : vector<8x1xf32> to vector<8x32xf32>
    %319 = arith.mulf %316, %318 : vector<8x32xf32>
    %320 = arith.addf %315, %319 : vector<8x32xf32>
    %321 = vector.extract_strided_slice %273 {offsets = [0, 288], sizes = [8, 32], strides = [1, 1]} : vector<8x512xf32> to vector<8x32xf32>
    %322 = vector.extract_strided_slice %88 {offsets = [8, 1], sizes = [8, 1], strides = [1, 1]} : vector<16x8xf32> to vector<8x1xf32>
    %323 = vector.broadcast %322 : vector<8x1xf32> to vector<8x32xf32>
    %324 = arith.mulf %321, %323 : vector<8x32xf32>
    %325 = arith.addf %320, %324 : vector<8x32xf32>
    %326 = vector.extract_strided_slice %273 {offsets = [0, 320], sizes = [8, 32], strides = [1, 1]} : vector<8x512xf32> to vector<8x32xf32>
    %327 = vector.extract_strided_slice %88 {offsets = [8, 2], sizes = [8, 1], strides = [1, 1]} : vector<16x8xf32> to vector<8x1xf32>
    %328 = vector.broadcast %327 : vector<8x1xf32> to vector<8x32xf32>
    %329 = arith.mulf %326, %328 : vector<8x32xf32>
    %330 = arith.addf %325, %329 : vector<8x32xf32>
    %331 = vector.extract_strided_slice %273 {offsets = [0, 352], sizes = [8, 32], strides = [1, 1]} : vector<8x512xf32> to vector<8x32xf32>
    %332 = vector.extract_strided_slice %88 {offsets = [8, 3], sizes = [8, 1], strides = [1, 1]} : vector<16x8xf32> to vector<8x1xf32>
    %333 = vector.broadcast %332 : vector<8x1xf32> to vector<8x32xf32>
    %334 = arith.mulf %331, %333 : vector<8x32xf32>
    %335 = arith.addf %330, %334 : vector<8x32xf32>
    %336 = vector.extract_strided_slice %273 {offsets = [0, 384], sizes = [8, 32], strides = [1, 1]} : vector<8x512xf32> to vector<8x32xf32>
    %337 = vector.extract_strided_slice %88 {offsets = [8, 4], sizes = [8, 1], strides = [1, 1]} : vector<16x8xf32> to vector<8x1xf32>
    %338 = vector.broadcast %337 : vector<8x1xf32> to vector<8x32xf32>
    %339 = arith.mulf %336, %338 : vector<8x32xf32>
    %340 = arith.addf %335, %339 : vector<8x32xf32>
    %341 = vector.extract_strided_slice %273 {offsets = [0, 416], sizes = [8, 32], strides = [1, 1]} : vector<8x512xf32> to vector<8x32xf32>
    %342 = vector.extract_strided_slice %88 {offsets = [8, 5], sizes = [8, 1], strides = [1, 1]} : vector<16x8xf32> to vector<8x1xf32>
    %343 = vector.broadcast %342 : vector<8x1xf32> to vector<8x32xf32>
    %344 = arith.mulf %341, %343 : vector<8x32xf32>
    %345 = arith.addf %340, %344 : vector<8x32xf32>
    %346 = vector.extract_strided_slice %273 {offsets = [0, 448], sizes = [8, 32], strides = [1, 1]} : vector<8x512xf32> to vector<8x32xf32>
    %347 = vector.extract_strided_slice %88 {offsets = [8, 6], sizes = [8, 1], strides = [1, 1]} : vector<16x8xf32> to vector<8x1xf32>
    %348 = vector.broadcast %347 : vector<8x1xf32> to vector<8x32xf32>
    %349 = arith.mulf %346, %348 : vector<8x32xf32>
    %350 = arith.addf %345, %349 : vector<8x32xf32>
    %351 = vector.extract_strided_slice %273 {offsets = [0, 480], sizes = [8, 32], strides = [1, 1]} : vector<8x512xf32> to vector<8x32xf32>
    %352 = vector.extract_strided_slice %88 {offsets = [8, 7], sizes = [8, 1], strides = [1, 1]} : vector<16x8xf32> to vector<8x1xf32>
    %353 = vector.broadcast %352 : vector<8x1xf32> to vector<8x32xf32>
    %354 = arith.mulf %351, %353 : vector<8x32xf32>
    %355 = arith.addf %350, %354 : vector<8x32xf32>
    %356 = tpu.concatenate %314, %355 in 0 : vector<8x32xf32>, vector<8x32xf32> -> vector<16x32xf32>
    %357 = vector.broadcast %5 : vector<1x32xf32> to vector<16x32xf32>
    %358 = arith.mulf %82, %357 : vector<16x32xf32>
    %359 = arith.addf %356, %358 : vector<16x32xf32>
    %360 = arith.negf %25 : vector<16x32xf32>
    %361 = math.exp %360 : vector<16x32xf32>
    %cst_35 = arith.constant 1.000000e+00 : f32
    %362 = vector.broadcast %cst_35 : f32 to vector<16x32xf32>
    %363 = arith.addf %362, %361 : vector<16x32xf32>
    %364 = arith.divf %362, %363 : vector<16x32xf32>
    %365 = arith.mulf %25, %364 : vector<16x32xf32>
    %366 = arith.mulf %359, %365 : vector<16x32xf32>
    %367 = arith.truncf %366 : vector<16x32xf32> to vector<16x32xbf16>
    %c0_36 = arith.constant 0 : index
    %c0_37 = arith.constant 0 : index
    %368 = vector.load %arg4[%c0_36, %c0_37] : memref<32x16xbf16, #tpu.memory_space<vmem>>, vector<32x16xbf16>
    %cst_38 = arith.constant dense<0.000000e+00> : vector<16x16xf32>
    %369 = tpu.matmul %367, %368, %cst_38 {dimension_numbers = #tpu.dot_dimension_numbers<[1], [0], [0], [1], [0, 0, 1, 1], [], []>} : vector<16x32xbf16>, vector<32x16xbf16>, vector<16x16xf32> -> vector<16x16xf32>
    %370 = arith.addf %369, %0 : vector<16x16xf32>
    %c0_39 = arith.constant 0 : index
    %c0_40 = arith.constant 0 : index
    %371 = vector.load %arg6[%c0_39, %c0_40] : memref<16x16xf32, #tpu.memory_space<vmem>>, vector<16x16xf32>
    tpu.vector_store %arg6[%c0_39, %c0_40], %370 {strides = array<i32>} : memref<16x16xf32, #tpu.memory_space<vmem>>, vector<16x16xf32>,
    return
  }
}

</mosaic_0001>

<llo_original>
// kernel: tpu_custom_call.1
$region0: #{tpu_custom_call.1}
  #allocation0 [shape = 'u32[]', space=smem, size = 0x4, offset = 0x4, fixed_abs, tag = 'smem constant byte address 0x4 - core index']
  #allocation1 [shape = 'u32[144,128]{1,0:T(1,128)}', space=vmem, size = 0x12000, scoped, tag = 'internal scratch']
  %s0 = inlined_call_operand.vmem [shape: f32[16,16], index: 0, kind: input, shape index: {}]
  %s1 = inlined_call_operand.vmem [shape: f32[1,16], index: 1, kind: input, shape index: {}]
  %s2 = inlined_call_operand.vmem [shape: bf16[16,64], index: 2, kind: input, shape index: {}]
  %s3 = inlined_call_operand.vmem [shape: bf16[32,20], index: 3, kind: input, shape index: {}]
  %s4 = inlined_call_operand.vmem [shape: bf16[32,16], index: 4, kind: input, shape index: {}]
  %s5 = inlined_call_operand.vmem [shape: f32[19,32], index: 5, kind: input, shape index: {}]
  %s6 = inlined_call_operand.hbm [shape: f32[16,16], index: 6, kind: output, shape index: {}]
  %s7 = sld [smem:[#allocation0]]
  $region34: #{tpu_custom_call.1} parent=0
    _
  %s9 = ssub.s32 1, %s7
  %s10 = scalar_select 0, %s9, %s7
  $region1: #{tpu_custom_call.1} parent=0
    #allocation2 [shape = 'u8[8192]{0}', space=vmem, size = 0x2000, scoped, tag = 'output window, operand 0, single buffered']
    #allocation3 [shape = 's32[1]{0}', space=sflag, size = 0x4, scoped, tag = 'scoped memory for tpu_custom_call.1']
    %11 = vsyncpa [#allocation3], 0
    // Predicated region
    $region2: #{tpu_custom_call.1} parent=1 // pred_check
      _
    $region3: #{tpu_custom_call.1} parent=1 // pred_check_branch
      %13 = sbr.rel (0) target = $region5
    $region4: #{tpu_custom_call.1} parent=1 // pred_region
      _
    $region5: #{tpu_custom_call.1} parent=1 // pred_fallthru
      _
    // Predicated region
    $region6: #{tpu_custom_call.1} parent=1 // pred_check
      _
    $region7: #{tpu_custom_call.1} parent=1 // pred_check_branch
      %15 = sbr.rel (0) target = $region9
    $region8: #{tpu_custom_call.1} parent=1 // pred_region
      _
    $region9: #{tpu_custom_call.1} parent=1 // pred_fallthru
      _
    // Predicated region
    $region10: #{tpu_custom_call.1} parent=1 // pred_check
      _
    $region11: #{tpu_custom_call.1} parent=1 // pred_check_branch
      %17 = sbr.rel (0) target = $region13
    $region12: #{tpu_custom_call.1} parent=1 // pred_region
      _
    $region13: #{tpu_custom_call.1} parent=1 // pred_fallthru
      _
    // Predicated region
    $region14: #{tpu_custom_call.1} parent=1 // pred_check
      _
    $region15: #{tpu_custom_call.1} parent=1 // pred_check_branch
      %19 = sbr.rel (0) target = $region17
    $region16: #{tpu_custom_call.1} parent=1 // pred_region
      _
    $region17: #{tpu_custom_call.1} parent=1 // pred_fallthru
      _
    // Predicated region
    $region18: #{tpu_custom_call.1} parent=1 // pred_check
      _
    $region19: #{tpu_custom_call.1} parent=1 // pred_check_branch
      %21 = sbr.rel (0) target = $region21
    $region20: #{tpu_custom_call.1} parent=1 // pred_region
      _
    $region21: #{tpu_custom_call.1} parent=1 // pred_fallthru
      _
    // Predicated region
    $region22: #{tpu_custom_call.1} parent=1 // pred_check
      _
    $region23: #{tpu_custom_call.1} parent=1 // pred_check_branch
      %23 = sbr.rel (0) target = $region25
    $region24: #{tpu_custom_call.1} parent=1 // pred_region
      _
    $region25: #{tpu_custom_call.1} parent=1 // pred_fallthru
      _
    %v25 = vld [vmem:[%s0] sm:$0xff]
    %v26 = vld [vmem:[%s0 + $0x8] sm:$0xff]
    %v27 = vld [vmem:[%s5] sm:$0xff]
    %v28 = vld [vmem:[%s5 + $0x8] sm:$0xff]
    %v29 = vld [vmem:[%s5 + $0x10] sm:$0x7]
    %v30 = vmul.f32 %v25, %v25
    %v31 = vmul.f32 %v26, %v26
    %vm32 = vcmask 130048
    %v33 = vsel %vm32, %v30, 0.0
    %34 = vadd.xlane.f32.xlu0 %v33
    %v35 = vpop.xlane.xlu0 %34
    %v36 = vsel %vm32, %v31, 0.0
    %37 = vadd.xlane.f32.xlu0 %v36
    %v38 = vpop.xlane.xlu0 %37
    %v39 = vrcp.pop 16.0
    %v40 = vmul.f32 %v35, %v39
    %v41 = vmul.f32 %v38, %v39
    %v42 = vadd.f32 %v40, 1e-05
    %v43 = vadd.f32 %v41, 1e-05
    %v44 = vrsqrt.pop %v42
    %v45 = vrsqrt.pop %v43
    %v46 = vmul.f32 %v25, %v44
    %v47 = vmul.f32 %v26, %v45
    %v48 = vld [vmem:[%s1] sm:$0x1]
    %v50 = vlaneseq
    %v51 = vshrl.u32 %v50, 7
    %v52 = vsub.s32 0, %v51
    %v53 = vrot.slane %v48, %v52
    %v55 = vmul.f32 %v46, %v53
    %v56 = vmul.f32 %v47, %v53
    %v57 = vpack.c.bf16 %v56, %v55
    %v58 = vld [vmem:[%s2] sm:$0xf]
    %v59 = vld [vmem:[%s2 + $0x4] sm:$0xf]
    %v62 = vunpack.c.l.b16 %v58
    %v63 = vunpack.c.l.b16 %v59
    %v64 = vpack.c.b16 %v63, %v62
    %v67 = vsel %vm32, %v57, 0
    %69 = vmatprep.subr.bf16.mxu0 0
    %70 = vmatpush1.bf16.msra.mxu0 %v64
    %71 = vmatprep.subr.bf16.mxu0 0
    %72 = vmatpush1.bf16.msra.mxu0 0
    %73 = vmatprep.subr.bf16.mxu0 0
    %74 = vmatpush1.bf16.msra.mxu0 0
    %75 = vmatprep.subr.bf16.mxu0 0
    %76 = vmatpush1.bf16.msra.mxu0 0
    %77 = vmatprep.subr.bf16.mxu0 0
    %78 = vmatpush1.bf16.msra.mxu0 0
    %79 = vmatprep.subr.bf16.mxu0 0
    %80 = vmatpush1.bf16.msra.mxu0 0
    %81 = vmatprep.subr.bf16.mxu0 0
    %82 = vmatpush1.bf16.msra.mxu0 0
    %83 = vmatprep.subr.bf16.mxu0 0
    %84 = vmatpush1.bf16.msra.mxu0 0
    %85 = vmatprep.subr.bf16.mxu0 0
    %86 = vmatpush1.bf16.msra.mxu0 0
    %87 = vmatprep.subr.bf16.mxu0 0
    %88 = vmatpush1.bf16.msra.mxu0 0
    %89 = vmatprep.subr.bf16.mxu0 0
    %90 = vmatpush1.bf16.msra.mxu0 0
    %91 = vmatprep.subr.bf16.mxu0 0
    %92 = vmatpush1.bf16.msra.mxu0 0
    %93 = vmatprep.subr.bf16.mxu0 0
    %94 = vmatpush1.bf16.msra.mxu0 0
    %95 = vmatprep.subr.bf16.mxu0 0
    %96 = vmatpush1.bf16.msra.mxu0 0
    %97 = vmatprep.subr.bf16.mxu0 0
    %98 = vmatpush1.bf16.msra.mxu0 0
    %99 = vmatprep.subr.bf16.mxu0 0
    %100 = vmatpush1.bf16.msra.mxu0 0
    %101 = vmatprep.mubr.bf16.mxu0 0
    %102 = vmatmul.mubr.bf16.gmra.mrb[0].mxu0 %v67
    %v103 = vpop.f32.mrb[0].mxu0
    %v104 = vadd.f32 0.0, %v103
    %v105 = vpop.f32.mrb[0].mxu0
    %v106 = vpop.f32.mrb[0].mxu0
    %v107 = vadd.f32 0.0, %v106
    %v108 = vpop.f32.mrb[0].mxu0
    %109 = vdwg.mxu0
    %v110 = vlaneseq
    %v111 = vshrl.u32 %v110, 7
    %v112 = vadd.s32 %v111, 8
    %vm113 = vcmp.lt.s32.totalorder %v111, 0
    %v114 = vsub.s32 0, %v111
    %v115 = vsel %vm113, %v114, %v111
    %v116 = vshrl.u32 %v115, 3
    %v117 = vand.u32 %v115, 7
    %v118 = vsub.s32 0, %v117
    %v119 = vsel %vm113, %v118, %v117
    %vm120 = vcmp.lt.s32.totalorder %v112, 0
    %v121 = vsub.s32 0, %v112
    %v122 = vsel %vm120, %v121, %v112
    %v123 = vshrl.u32 %v122, 3
    %v124 = vand.u32 %v122, 7
    %v125 = vsub.s32 0, %v124
    %v126 = vsel %vm120, %v125, %v124
    %vm127 = vcmp.ne.s32.totalorder %v119, 0
    %vm128 = vcmp.ne.s32.totalorder %v126, 0
    %vm129 = vcmp.lt.s32.totalorder %v119, 0
    %vm130 = vcmp.lt.s32.totalorder %v126, 0
    %vm131 = vmand %vm129, %vm127
    %vm132 = vmand %vm130, %vm128
    %v133 = vadd.s32 %v119, 8
    %v134 = vadd.s32 %v126, 8
    %v135 = vsel %vm131, %v133, %v119
    %v136 = vsel %vm132, %v134, %v126
    %vm137 = vcmp.ge.s32.totalorder %v135, 3
    %vm138 = vcmp.ge.s32.totalorder %v136, 3
    %v139 = vrot.slane %v104, 5
    %v140 = vrot.slane %v107, 5
    %vm141 = vcmp.lt.s32.totalorder %v111, 3
    %v142 = vsel %vm141, %v139, %v140
    %v143 = vsel %vm141, %v140, %v139
    %v144 = vsel %vm137, %v143, 0.0
    %v145 = vsel %vm138, %v142, 0.0
    %v146 = vlaneseq
    %v147 = vshrl.u32 %v146, 7
    %v148 = vsub.s32 0, %v147
    %v149 = vrot.slane %v27, %v148
    %v150 = vmul.f32 %v144, %v149
    %v151 = vmul.f32 %v145, %v149
    %v152 = vadd.f32 %v150, 0.0
    %v153 = vadd.f32 %v151, 0.0
    %vm154 = vcmp.ge.s32.totalorder %v135, 2
    %vm155 = vcmp.ge.s32.totalorder %v136, 2
    %v156 = vrot.slane %v104, 6
    %v157 = vrot.slane %v107, 6
    %vm158 = vcmp.lt.s32.totalorder %v111, 2
    %v159 = vsel %vm158, %v156, %v157
    %v160 = vsel %vm158, %v157, %v156
    %v161 = vsel %vm154, %v160, 0.0
    %v162 = vsel %vm155, %v159, 0.0
    %v163 = vlaneseq
    %v164 = vshrl.u32 %v163, 7
    %v165 = vsub.s32 1, %v164
    %v166 = vrot.slane %v27, %v165
    %v167 = vmul.f32 %v161, %v166
    %v168 = vmul.f32 %v162, %v166
    %v169 = vadd.f32 %v152, %v167
    %v170 = vadd.f32 %v153, %v168
    %vm171 = vcmp.ge.s32.totalorder %v135, 1
    %vm172 = vcmp.ge.s32.totalorder %v136, 1
    %v173 = vrot.slane %v104, 7
    %v174 = vrot.slane %v107, 7
    %vm175 = vcmp.lt.s32.totalorder %v111, 1
    %v176 = vsel %vm175, %v173, %v174
    %v177 = vsel %vm175, %v174, %v173
    %v178 = vsel %vm171, %v177, 0.0
    %v179 = vsel %vm172, %v176, 0.0
    %v180 = vlaneseq
    %v181 = vshrl.u32 %v180, 7
    %v182 = vsub.s32 2, %v181
    %v183 = vrot.slane %v27, %v182
    %v184 = vmul.f32 %v178, %v183
    %v185 = vmul.f32 %v179, %v183
    %v186 = vadd.f32 %v169, %v184
    %v187 = vadd.f32 %v170, %v185
    %v188 = vlaneseq
    %v189 = vshrl.u32 %v188, 7
    %v190 = vsub.s32 3, %v189
    %v191 = vrot.slane %v27, %v190
    %v192 = vmul.f32 %v104, %v191
    %v193 = vmul.f32 %v107, %v191
    %v194 = vadd.f32 %v186, %v192
    %v195 = vadd.f32 %v187, %v193
    %v196 = vlaneseq
    %v197 = vshrl.u32 %v196, 7
    %v198 = vsub.s32 4, %v197
    %v199 = vrot.slane %v27, %v198
    %v200 = vadd.f32 %v194, %v199
    %v201 = vadd.f32 %v195, %v199
    %v202 = vxor.u32 %v200, 2147483648
    %v203 = vxor.u32 %v201, 2147483648
    %v204 = vmul.f32 %v202, 1.442695
    %v205 = vpow.pop %v204
    %v206 = vmul.f32 %v203, 1.442695
    %v207 = vpow.pop %v206
    %v208 = vadd.f32 %v205, 1.0
    %v209 = vadd.f32 %v207, 1.0
    %v210 = vrcp.pop %v208
    %v211 = vmul.f32 1.0, %v210
    %v212 = vrcp.pop %v209
    %v213 = vmul.f32 1.0, %v212
    %v214 = vmul.f32 %v200, %v211
    %v215 = vmul.f32 %v201, %v213
    %v216 = vpack.c.bf16 %v215, %v214
    %v217 = vld [vmem:[%s3] sm:$0xf]
    %v218 = vld [vmem:[%s3 + $0x4] sm:$0xf]
    %v219 = vld [vmem:[%s3 + $0x8] sm:$0xf]
    %v220 = vld [vmem:[%s3 + $0xc] sm:$0xf]
    %v225 = vunpack.c.l.b16 %v217
    %v226 = vunpack.c.l.b16 %v218
    %v227 = vunpack.c.l.b16 %v219
    %v228 = vunpack.c.l.b16 %v220
    %v229 = vpack.c.b16 %v226, %v225
    %v230 = vpack.c.b16 %v228, %v227
    %vm233 = vcmask 261120
    %v235 = vsel %vm233, %v216, 0
    %237 = vmatprep.subr.bf16.mxu0 0
    %238 = vmatpush1.bf16.msra.mxu0 %v229
    %239 = vmatprep.subr.bf16.mxu0 0
    %240 = vmatpush1.bf16.msra.mxu0 %v230
    %241 = vmatprep.subr.bf16.mxu0 0
    %242 = vmatpush1.bf16.msra.mxu0 0
    %243 = vmatprep.subr.bf16.mxu0 0
    %244 = vmatpush1.bf16.msra.mxu0 0
    %245 = vmatprep.subr.bf16.mxu0 0
    %246 = vmatpush1.bf16.msra.mxu0 0
    %247 = vmatprep.subr.bf16.mxu0 0
    %248 = vmatpush1.bf16.msra.mxu0 0
    %249 = vmatprep.subr.bf16.mxu0 0
    %250 = vmatpush1.bf16.msra.mxu0 0
    %251 = vmatprep.subr.bf16.mxu0 0
    %252 = vmatpush1.bf16.msra.mxu0 0
    %253 = vmatprep.subr.bf16.mxu0 0
    %254 = vmatpush1.bf16.msra.mxu0 0
    %255 = vmatprep.subr.bf16.mxu0 0
    %256 = vmatpush1.bf16.msra.mxu0 0
    %257 = vmatprep.subr.bf16.mxu0 0
    %258 = vmatpush1.bf16.msra.mxu0 0
    %259 = vmatprep.subr.bf16.mxu0 0
    %260 = vmatpush1.bf16.msra.mxu0 0
    %261 = vmatprep.subr.bf16.mxu0 0
    %262 = vmatpush1.bf16.msra.mxu0 0
    %263 = vmatprep.subr.bf16.mxu0 0
    %264 = vmatpush1.bf16.msra.mxu0 0
    %265 = vmatprep.subr.bf16.mxu0 0
    %266 = vmatpush1.bf16.msra.mxu0 0
    %267 = vmatprep.subr.bf16.mxu0 0
    %268 = vmatpush1.bf16.msra.mxu0 0
    %269 = vmatprep.mubr.bf16.mxu0 0
    %270 = vmatmul.mubr.bf16.gmra.mrb[0].mxu0 %v235
    %v271 = vpop.f32.mrb[0].mxu0
    %v272 = vadd.f32 0.0, %v271
    %v273 = vpop.f32.mrb[0].mxu0
    %v274 = vpop.f32.mrb[0].mxu0
    %v275 = vadd.f32 0.0, %v274
    %v276 = vpop.f32.mrb[0].mxu0
    %277 = vdwg.mxu0
    %v278 = vlaneseq
    %v279 = vshrl.u32 %v278, 7
    %v280 = vsub.s32 5, %v279
    %v281 = vrot.slane %v27, %v280
    %v282 = vadd.f32 %v281, 0.0
    %284 = vset.pattern.permute.xlu0 0
    %285 = vperm.xlu0 %284, %v272
    %v286 = vpop.permute.xlu0 %285
    %289 = vset.pattern.permute.xlu0 0
    %290 = vperm.xlu0 %289, %v275
    %v291 = vpop.permute.xlu0 %290
    %v293 = vlaneseq
    %v294 = vshrl.u32 %v293, 7
    %v295 = vsub.s32 7, %v294
    %v296 = vrot.slane %v28, %v295
    %v297 = vmul.f32 %v286, %v296
    %v298 = vmul.f32 %v291, %v296
    %v299 = vadd.f32 %v282, %v297
    %v300 = vadd.f32 %v282, %v298
    %301 = vset.pattern.permute.xlu0 1
    %302 = vperm.xlu0 %301, %v272
    %v303 = vpop.permute.xlu0 %302
    %305 = vset.pattern.permute.xlu0 1
    %306 = vperm.xlu0 %305, %v275
    %v307 = vpop.permute.xlu0 %306
    %v309 = vlaneseq
    %v310 = vshrl.u32 %v309, 7
    %v311 = vsub.s32 0, %v310
    %v312 = vrot.slane %v29, %v311
    %v313 = vmul.f32 %v303, %v312
    %v314 = vmul.f32 %v307, %v312
    %v315 = vadd.f32 %v299, %v313
    %v316 = vadd.f32 %v300, %v314
    %317 = vset.pattern.permute.xlu0 2
    %318 = vperm.xlu0 %317, %v272
    %v319 = vpop.permute.xlu0 %318
    %321 = vset.pattern.permute.xlu0 2
    %322 = vperm.xlu0 %321, %v275
    %v323 = vpop.permute.xlu0 %322
    %v325 = vlaneseq
    %v326 = vshrl.u32 %v325, 7
    %v327 = vsub.s32 1, %v326
    %v328 = vrot.slane %v29, %v327
    %v329 = vmul.f32 %v319, %v328
    %v330 = vmul.f32 %v323, %v328
    %v331 = vadd.f32 %v315, %v329
    %v332 = vadd.f32 %v316, %v330
    %333 = vset.pattern.permute.xlu0 3
    %334 = vperm.xlu0 %333, %v272
    %v335 = vpop.permute.xlu0 %334
    %337 = vset.pattern.permute.xlu0 3
    %338 = vperm.xlu0 %337, %v275
    %v339 = vpop.permute.xlu0 %338
    %v341 = vlaneseq
    %v342 = vshrl.u32 %v341, 7
    %v343 = vsub.s32 2, %v342
    %v344 = vrot.slane %v29, %v343
    %v345 = vmul.f32 %v335, %v344
    %v346 = vmul.f32 %v339, %v344
    %v347 = vadd.f32 %v331, %v345
    %v348 = vadd.f32 %v332, %v346
    %v349 = vand.u32 2147483647, %v347
    %v350 = vand.u32 2147483647, %v348
    %v351 = vsub.f32 0.0, %v349
    %v352 = vsub.f32 0.0, %v350
    %v353 = vmul.f32 %v351, 1.442695
    %v354 = vpow.pop %v353
    %v355 = vmul.f32 %v352, 1.442695
    %v356 = vpow.pop %v355
    %v357 = vadd.f32 %v354, 1.0
    %v358 = vadd.f32 %v356, 1.0
    %vm359 = vcmp.eq.f32.partialorder %v357, 1.0
    %vm360 = vcmp.eq.f32.partialorder %v358, 1.0
    %v361 = vlog2.pop %v357
    %v362 = vmul.f32 %v361, 0.6931472
    %v363 = vlog2.pop %v358
    %v364 = vmul.f32 %v363, 0.6931472
    %v365 = vsub.f32 %v357, 1.0
    %v366 = vsub.f32 %v358, 1.0
    %v367 = vrcp.pop %v365
    %v368 = vmul.f32 %v354, %v367
    %v369 = vrcp.pop %v366
    %v370 = vmul.f32 %v356, %v369
    %v371 = vmul.f32 %v362, %v368
    %v372 = vmul.f32 %v364, %v370
    %v373 = vsel %vm359, %v354, %v371
    %v374 = vsel %vm360, %v356, %v372
    %v375 = vmax.f32 %v347, 0.0
    %v376 = vmax.f32 %v348, 0.0
    %v377 = vadd.f32 %v375, %v373
    %v378 = vadd.f32 %v376, %v374
    %v379 = vmul.f32 %v27, 1.442695
    %v380 = vpow.pop %v379
    %v381 = vmul.f32 %v28, 1.442695
    %v382 = vpow.pop %v381
    %v383 = vsub.f32 0.0, %v380
    %v384 = vsub.f32 0.0, %v382
    %v385 = vmul.f32 %v377, %v214
    %v386 = vmul.f32 %v378, %v215
    %v387 = vlaneseq
    %v388 = vshrl.u32 %v387, 7
    %v389 = vsub.s32 7, %v388
    %v390 = vrot.slane %v383, %v389
    %v391 = vmul.f32 %v377, %v390
    %392 = vset.pattern.permute.xlu0 4
    %393 = vperm.xlu0 %392, %v272
    %v394 = vpop.permute.xlu0 %393
    %v396 = vmul.f32 %v385, %v394
    %v397 = vlaneseq
    %v398 = vshrl.u32 %v397, 7
    %v399 = vsub.s32 0, %v398
    %v400 = vrot.slane %v384, %v399
    %v401 = vmul.f32 %v377, %v400
    %402 = vset.pattern.permute.xlu0 5
    %403 = vperm.xlu0 %402, %v272
    %v404 = vpop.permute.xlu0 %403
    %v406 = vmul.f32 %v385, %v404
    %v407 = vlaneseq
    %v408 = vshrl.u32 %v407, 7
    %v409 = vsub.s32 1, %v408
    %v410 = vrot.slane %v384, %v409
    %v411 = vmul.f32 %v377, %v410
    %412 = vset.pattern.permute.xlu0 6
    %413 = vperm.xlu0 %412, %v272
    %v414 = vpop.permute.xlu0 %413
    %v416 = vmul.f32 %v385, %v414
    %v417 = vlaneseq
    %v418 = vshrl.u32 %v417, 7
    %v419 = vsub.s32 2, %v418
    %v420 = vrot.slane %v384, %v419
    %v421 = vmul.f32 %v377, %v420
    %422 = vset.pattern.permute.xlu0 7
    %423 = vperm.xlu0 %422, %v272
    %v424 = vpop.permute.xlu0 %423
    %v426 = vmul.f32 %v385, %v424
    %v427 = vlaneseq
    %v428 = vshrl.u32 %v427, 7
    %v429 = vsub.s32 3, %v428
    %v430 = vrot.slane %v384, %v429
    %v431 = vmul.f32 %v377, %v430
    %432 = vset.pattern.permute.xlu0 8
    %433 = vperm.xlu0 %432, %v272
    %v434 = vpop.permute.xlu0 %433
    %v436 = vmul.f32 %v385, %v434
    %v437 = vlaneseq
    %v438 = vshrl.u32 %v437, 7
    %v439 = vsub.s32 4, %v438
    %v440 = vrot.slane %v384, %v439
    %v441 = vmul.f32 %v377, %v440
    %442 = vset.pattern.permute.xlu0 9
    %443 = vperm.xlu0 %442, %v272
    %v444 = vpop.permute.xlu0 %443
    %v446 = vmul.f32 %v385, %v444
    %v447 = vlaneseq
    %v448 = vshrl.u32 %v447, 7
    %v449 = vsub.s32 5, %v448
    %v450 = vrot.slane %v384, %v449
    %v451 = vmul.f32 %v377, %v450
    %452 = vset.pattern.permute.xlu0 10
    %453 = vperm.xlu0 %452, %v272
    %v454 = vpop.permute.xlu0 %453
    %v456 = vmul.f32 %v385, %v454
    %v457 = vlaneseq
    %v458 = vshrl.u32 %v457, 7
    %v459 = vsub.s32 6, %v458
    %v460 = vrot.slane %v384, %v459
    %v461 = vmul.f32 %v377, %v460
    %462 = vset.pattern.permute.xlu0 11
    %463 = vperm.xlu0 %462, %v272
    %v464 = vpop.permute.xlu0 %463
    %v466 = vmul.f32 %v385, %v464
    %v467 = vmul.f32 %v378, %v390
    %468 = vset.pattern.permute.xlu0 4
    %469 = vperm.xlu0 %468, %v275
    %v470 = vpop.permute.xlu0 %469
    %v472 = vmul.f32 %v386, %v470
    %v473 = vmul.f32 %v378, %v400
    %474 = vset.pattern.permute.xlu0 5
    %475 = vperm.xlu0 %474, %v275
    %v476 = vpop.permute.xlu0 %475
    %v478 = vmul.f32 %v386, %v476
    %v479 = vmul.f32 %v378, %v410
    %480 = vset.pattern.permute.xlu0 6
    %481 = vperm.xlu0 %480, %v275
    %v482 = vpop.permute.xlu0 %481
    %v484 = vmul.f32 %v386, %v482
    %v485 = vmul.f32 %v378, %v420
    %486 = vset.pattern.permute.xlu0 7
    %487 = vperm.xlu0 %486, %v275
    %v488 = vpop.permute.xlu0 %487
    %v490 = vmul.f32 %v386, %v488
    %v491 = vmul.f32 %v378, %v430
    %492 = vset.pattern.permute.xlu0 8
    %493 = vperm.xlu0 %492, %v275
    %v494 = vpop.permute.xlu0 %493
    %v496 = vmul.f32 %v386, %v494
    %v497 = vmul.f32 %v378, %v440
    %498 = vset.pattern.permute.xlu0 9
    %499 = vperm.xlu0 %498, %v275
    %v500 = vpop.permute.xlu0 %499
    %v502 = vmul.f32 %v386, %v500
    %v503 = vmul.f32 %v378, %v450
    %504 = vset.pattern.permute.xlu0 10
    %505 = vperm.xlu0 %504, %v275
    %v506 = vpop.permute.xlu0 %505
    %v508 = vmul.f32 %v386, %v506
    %v509 = vmul.f32 %v378, %v460
    %510 = vset.pattern.permute.xlu0 11
    %511 = vperm.xlu0 %510, %v275
    %v512 = vpop.permute.xlu0 %511
    %v514 = vmul.f32 %v386, %v512
    %516 = vrot.lane.b32.xlu0 %v401, 32
    %v517 = vpop.permute.xlu0 %516
    %520 = vrot.lane.b32.xlu0 %v411, 64
    %v521 = vpop.permute.xlu0 %520
    %524 = vrot.lane.b32.xlu0 %v421, 96
    %v525 = vpop.permute.xlu0 %524
    %528 = vrot.lane.b32.xlu0 %v441, 32
    %v529 = vpop.permute.xlu0 %528
    %532 = vrot.lane.b32.xlu0 %v451, 64
    %v533 = vpop.permute.xlu0 %532
    %536 = vrot.lane.b32.xlu0 %v461, 96
    %v537 = vpop.permute.xlu0 %536
    %540 = vrot.lane.b32.xlu0 %v473, 32
    %v541 = vpop.permute.xlu0 %540
    %544 = vrot.lane.b32.xlu0 %v479, 64
    %v545 = vpop.permute.xlu0 %544
    %548 = vrot.lane.b32.xlu0 %v485, 96
    %v549 = vpop.permute.xlu0 %548
    %552 = vrot.lane.b32.xlu0 %v497, 32
    %v553 = vpop.permute.xlu0 %552
    %556 = vrot.lane.b32.xlu0 %v503, 64
    %v557 = vpop.permute.xlu0 %556
    %560 = vrot.lane.b32.xlu0 %v509, 96
    %v561 = vpop.permute.xlu0 %560
    %v563 = vsel %vm233, %v391, %v517
    %vm564 = vcmask 523264
    %v565 = vsel %vm564, %v563, %v521
    %vm566 = vcmask 785408
    %v567 = vsel %vm566, %v565, %v525
    %v568 = vsel %vm233, %v431, %v529
    %v569 = vsel %vm564, %v568, %v533
    %v570 = vsel %vm566, %v569, %v537
    %v571 = vsel %vm233, %v467, %v541
    %v572 = vsel %vm564, %v571, %v545
    %v573 = vsel %vm566, %v572, %v549
    %v574 = vsel %vm233, %v491, %v553
    %v575 = vsel %vm564, %v574, %v557
    %v576 = vsel %vm566, %v575, %v561
    %v577 = vmul.f32 %v567, 1.442695
    %v578 = vpow.pop %v577
    %v579 = vmul.f32 %v570, 1.442695
    %v580 = vpow.pop %v579
    %v581 = vmul.f32 %v573, 1.442695
    %v582 = vpow.pop %v581
    %v583 = vmul.f32 %v576, 1.442695
    %v584 = vpow.pop %v583
    %586 = vrot.lane.b32.xlu0 %v406, 32
    %v587 = vpop.permute.xlu0 %586
    %590 = vrot.lane.b32.xlu0 %v416, 64
    %v591 = vpop.permute.xlu0 %590
    %594 = vrot.lane.b32.xlu0 %v426, 96
    %v595 = vpop.permute.xlu0 %594
    %598 = vrot.lane.b32.xlu0 %v446, 32
    %v599 = vpop.permute.xlu0 %598
    %602 = vrot.lane.b32.xlu0 %v456, 64
    %v603 = vpop.permute.xlu0 %602
    %606 = vrot.lane.b32.xlu0 %v466, 96
    %v607 = vpop.permute.xlu0 %606
    %610 = vrot.lane.b32.xlu0 %v478, 32
    %v611 = vpop.permute.xlu0 %610
    %614 = vrot.lane.b32.xlu0 %v484, 64
    %v615 = vpop.permute.xlu0 %614
    %618 = vrot.lane.b32.xlu0 %v490, 96
    %v619 = vpop.permute.xlu0 %618
    %622 = vrot.lane.b32.xlu0 %v502, 32
    %v623 = vpop.permute.xlu0 %622
    %626 = vrot.lane.b32.xlu0 %v508, 64
    %v627 = vpop.permute.xlu0 %626
    %630 = vrot.lane.b32.xlu0 %v514, 96
    %v631 = vpop.permute.xlu0 %630
    %v633 = vsel %vm233, %v396, %v587
    %v634 = vsel %vm564, %v633, %v591
    %v635 = vsel %vm566, %v634, %v595
    %v636 = vsel %vm233, %v436, %v599
    %v637 = vsel %vm564, %v636, %v603
    %v638 = vsel %vm566, %v637, %v607
    %v639 = vsel %vm233, %v472, %v611
    %v640 = vsel %vm564, %v639, %v615
    %v641 = vsel %vm566, %v640, %v619
    %v642 = vsel %vm233, %v496, %v623
    %v643 = vsel %vm564, %v642, %v627
    %v644 = vsel %vm566, %v643, %v631
    %v645 = vmul.f32 %v578, 0.0
    %v646 = vmul.f32 %v580, 0.0
    %v647 = vmul.f32 %v582, 0.0
    %v648 = vmul.f32 %v584, 0.0
    %v649 = vadd.f32 %v645, %v635
    %v650 = vadd.f32 %v646, %v638
    %v651 = vadd.f32 %v647, %v641
    %v652 = vadd.f32 %v648, %v644
    %v657 = vrot.slane %v649, 7
    %v658 = vrot.slane %v650, 7
    %v659 = vrot.slane %v651, 7
    %v660 = vrot.slane %v652, 7
    %v665 = vmul.f32 %v578, %v657
    %v666 = vmul.f32 %v580, %v658
    %v667 = vmul.f32 %v582, %v659
    %v668 = vmul.f32 %v584, %v660
    %v669 = vadd.f32 %v665, %v635
    %v670 = vadd.f32 %v666, %v638
    %v671 = vadd.f32 %v667, %v641
    %v672 = vadd.f32 %v668, %v644
    %v677 = vrot.slane %v669, 7
    %v678 = vrot.slane %v670, 7
    %v679 = vrot.slane %v671, 7
    %v680 = vrot.slane %v672, 7
    %v685 = vmul.f32 %v578, %v677
    %v686 = vmul.f32 %v580, %v678
    %v687 = vmul.f32 %v582, %v679
    %v688 = vmul.f32 %v584, %v680
    %v689 = vadd.f32 %v685, %v635
    %v690 = vadd.f32 %v686, %v638
    %v691 = vadd.f32 %v687, %v641
    %v692 = vadd.f32 %v688, %v644
    %v697 = vrot.slane %v689, 7
    %v698 = vrot.slane %v690, 7
    %v699 = vrot.slane %v691, 7
    %v700 = vrot.slane %v692, 7
    %v705 = vmul.f32 %v578, %v697
    %v706 = vmul.f32 %v580, %v698
    %v707 = vmul.f32 %v582, %v699
    %v708 = vmul.f32 %v584, %v700
    %v709 = vadd.f32 %v705, %v635
    %v710 = vadd.f32 %v706, %v638
    %v711 = vadd.f32 %v707, %v641
    %v712 = vadd.f32 %v708, %v644
    %v717 = vrot.slane %v709, 7
    %v718 = vrot.slane %v710, 7
    %v719 = vrot.slane %v711, 7
    %v720 = vrot.slane %v712, 7
    %v725 = vmul.f32 %v578, %v717
    %v726 = vmul.f32 %v580, %v718
    %v727 = vmul.f32 %v582, %v719
    %v728 = vmul.f32 %v584, %v720
    %v729 = vadd.f32 %v725, %v635
    %v730 = vadd.f32 %v726, %v638
    %v731 = vadd.f32 %v727, %v641
    %v732 = vadd.f32 %v728, %v644
    %v737 = vrot.slane %v729, 7
    %v738 = vrot.slane %v730, 7
    %v739 = vrot.slane %v731, 7
    %v740 = vrot.slane %v732, 7
    %v745 = vmul.f32 %v578, %v737
    %v746 = vmul.f32 %v580, %v738
    %v747 = vmul.f32 %v582, %v739
    %v748 = vmul.f32 %v584, %v740
    %v749 = vadd.f32 %v745, %v635
    %v750 = vadd.f32 %v746, %v638
    %v751 = vadd.f32 %v747, %v641
    %v752 = vadd.f32 %v748, %v644
    %v757 = vrot.slane %v749, 7
    %v758 = vrot.slane %v750, 7
    %v759 = vrot.slane %v751, 7
    %v760 = vrot.slane %v752, 7
    %v765 = vmul.f32 %v578, %v757
    %v766 = vmul.f32 %v580, %v758
    %v767 = vmul.f32 %v582, %v759
    %v768 = vmul.f32 %v584, %v760
    %v769 = vadd.f32 %v765, %v635
    %v770 = vadd.f32 %v766, %v638
    %v771 = vadd.f32 %v767, %v641
    %v772 = vadd.f32 %v768, %v644
    %v777 = vrot.slane %v769, 7
    %v778 = vrot.slane %v770, 7
    %v779 = vrot.slane %v771, 7
    %v780 = vrot.slane %v772, 7
    %v785 = vmul.f32 %v578, %v777
    %v786 = vmul.f32 %v580, %v778
    %v787 = vmul.f32 %v582, %v779
    %v788 = vmul.f32 %v584, %v780
    %v789 = vadd.f32 %v785, %v635
    %v790 = vadd.f32 %v786, %v638
    %v791 = vadd.f32 %v787, %v641
    %v792 = vadd.f32 %v788, %v644
    %vm793 = vcmask 1040384
    %v794 = vsel %vm793, %v649, %v669
    %v795 = vsel %vm793, %v650, %v670
    %v796 = vsel %vm793, %v651, %v671
    %v797 = vsel %vm793, %v652, %v672
    %vm798 = vcmask 1041408
    %v799 = vsel %vm798, %v794, %v689
    %v800 = vsel %vm798, %v795, %v690
    %v801 = vsel %vm798, %v796, %v691
    %v802 = vsel %vm798, %v797, %v692
    %vm803 = vcmask 1042432
    %v804 = vsel %vm803, %v799, %v709
    %v805 = vsel %vm803, %v800, %v710
    %v806 = vsel %vm803, %v801, %v711
    %v807 = vsel %vm803, %v802, %v712
    %vm808 = vcmask 1043456
    %v809 = vsel %vm808, %v804, %v729
    %v810 = vsel %vm808, %v805, %v730
    %v811 = vsel %vm808, %v806, %v731
    %v812 = vsel %vm808, %v807, %v732
    %vm813 = vcmask 1044480
    %v814 = vsel %vm813, %v809, %v749
    %v815 = vsel %vm813, %v810, %v750
    %v816 = vsel %vm813, %v811, %v751
    %v817 = vsel %vm813, %v812, %v752
    %vm818 = vcmask 1045504
    %v819 = vsel %vm818, %v814, %v769
    %v820 = vsel %vm818, %v815, %v770
    %v821 = vsel %vm818, %v816, %v771
    %v822 = vsel %vm818, %v817, %v772
    %vm823 = vcmask 1046528
    %v824 = vsel %vm823, %v819, %v789
    %v825 = vsel %vm823, %v820, %v790
    %v826 = vsel %vm823, %v821, %v791
    %v827 = vsel %vm823, %v822, %v792
    %828 = vset.pattern.permute.xlu0 12
    %829 = vperm.xlu0 %828, %v272
    %v830 = vpop.permute.xlu0 %829
    %v832 = vmul.f32 %v824, %v830
    %v833 = vadd.f32 %v832, 0.0
    %834 = vset.pattern.permute.xlu0 13
    %835 = vperm.xlu0 %834, %v272
    %v836 = vpop.permute.xlu0 %835
    %v838 = vmul.f32 %v824, %v836
    %840 = vrot.lane.b32.xlu0 %v838, 96
    %v841 = vpop.permute.xlu0 %840
    %v843 = vadd.f32 %v833, %v841
    %844 = vset.pattern.permute.xlu0 14
    %845 = vperm.xlu0 %844, %v272
    %v846 = vpop.permute.xlu0 %845
    %v848 = vmul.f32 %v824, %v846
    %850 = vrot.lane.b32.xlu0 %v848, 64
    %v851 = vpop.permute.xlu0 %850
    %v853 = vadd.f32 %v843, %v851
    %854 = vset.pattern.permute.xlu0 15
    %855 = vperm.xlu0 %854, %v272
    %v856 = vpop.permute.xlu0 %855
    %v858 = vmul.f32 %v824, %v856
    %860 = vrot.lane.b32.xlu0 %v858, 32
    %v861 = vpop.permute.xlu0 %860
    %v863 = vadd.f32 %v853, %v861
    %864 = vset.pattern.permute.xlu0 16
    %865 = vperm.xlu0 %864, %v272
    %v866 = vpop.permute.xlu0 %865
    %v868 = vmul.f32 %v825, %v866
    %v869 = vadd.f32 %v863, %v868
    %870 = vset.pattern.permute.xlu0 17
    %871 = vperm.xlu0 %870, %v272
    %v872 = vpop.permute.xlu0 %871
    %v874 = vmul.f32 %v825, %v872
    %876 = vrot.lane.b32.xlu0 %v874, 96
    %v877 = vpop.permute.xlu0 %876
    %v879 = vadd.f32 %v869, %v877
    %880 = vset.pattern.permute.xlu0 18
    %881 = vperm.xlu0 %880, %v272
    %v882 = vpop.permute.xlu0 %881
    %v884 = vmul.f32 %v825, %v882
    %886 = vrot.lane.b32.xlu0 %v884, 64
    %v887 = vpop.permute.xlu0 %886
    %v889 = vadd.f32 %v879, %v887
    %890 = vset.pattern.permute.xlu0 19
    %891 = vperm.xlu0 %890, %v272
    %v892 = vpop.permute.xlu0 %891
    %v894 = vmul.f32 %v825, %v892
    %896 = vrot.lane.b32.xlu0 %v894, 32
    %v897 = vpop.permute.xlu0 %896
    %v899 = vadd.f32 %v889, %v897
    %900 = vset.pattern.permute.xlu0 12
    %901 = vperm.xlu0 %900, %v275
    %v902 = vpop.permute.xlu0 %901
    %v904 = vmul.f32 %v826, %v902
    %v905 = vadd.f32 %v904, 0.0
    %906 = vset.pattern.permute.xlu0 13
    %907 = vperm.xlu0 %906, %v275
    %v908 = vpop.permute.xlu0 %907
    %v910 = vmul.f32 %v826, %v908
    %912 = vrot.lane.b32.xlu0 %v910, 96
    %v913 = vpop.permute.xlu0 %912
    %v915 = vadd.f32 %v905, %v913
    %916 = vset.pattern.permute.xlu0 14
    %917 = vperm.xlu0 %916, %v275
    %v918 = vpop.permute.xlu0 %917
    %v920 = vmul.f32 %v826, %v918
    %922 = vrot.lane.b32.xlu0 %v920, 64
    %v923 = vpop.permute.xlu0 %922
    %v925 = vadd.f32 %v915, %v923
    %926 = vset.pattern.permute.xlu0 15
    %927 = vperm.xlu0 %926, %v275
    %v928 = vpop.permute.xlu0 %927
    %v930 = vmul.f32 %v826, %v928
    %932 = vrot.lane.b32.xlu0 %v930, 32
    %v933 = vpop.permute.xlu0 %932
    %v935 = vadd.f32 %v925, %v933
    %936 = vset.pattern.permute.xlu0 16
    %937 = vperm.xlu0 %936, %v275
    %v938 = vpop.permute.xlu0 %937
    %v940 = vmul.f32 %v827, %v938
    %v941 = vadd.f32 %v935, %v940
    %942 = vset.pattern.permute.xlu0 17
    %943 = vperm.xlu0 %942, %v275
    %v944 = vpop.permute.xlu0 %943
    %v946 = vmul.f32 %v827, %v944
    %948 = vrot.lane.b32.xlu0 %v946, 96
    %v949 = vpop.permute.xlu0 %948
    %v951 = vadd.f32 %v941, %v949
    %952 = vset.pattern.permute.xlu0 18
    %953 = vperm.xlu0 %952, %v275
    %v954 = vpop.permute.xlu0 %953
    %v956 = vmul.f32 %v827, %v954
    %958 = vrot.lane.b32.xlu0 %v956, 64
    %v959 = vpop.permute.xlu0 %958
    %v961 = vadd.f32 %v951, %v959
    %962 = vset.pattern.permute.xlu0 19
    %963 = vperm.xlu0 %962, %v275
    %v964 = vpop.permute.xlu0 %963
    %v966 = vmul.f32 %v827, %v964
    %968 = vrot.lane.b32.xlu0 %v966, 32
    %v969 = vpop.permute.xlu0 %968
    %v971 = vadd.f32 %v961, %v969
    %v972 = vlaneseq
    %v973 = vshrl.u32 %v972, 7
    %v974 = vsub.s32 6, %v973
    %v975 = vrot.slane %v27, %v974
    %v976 = vmul.f32 %v214, %v975
    %v977 = vmul.f32 %v215, %v975
    %v978 = vadd.f32 %v899, %v976
    %v979 = vadd.f32 %v971, %v977
    %v980 = vxor.u32 %v104, 2147483648
    %v981 = vxor.u32 %v107, 2147483648
    %v982 = vmul.f32 %v980, 1.442695
    %v983 = vpow.pop %v982
    %v984 = vmul.f32 %v981, 1.442695
    %v985 = vpow.pop %v984
    %v986 = vadd.f32 %v983, 1.0
    %v987 = vadd.f32 %v985, 1.0
    %v988 = vrcp.pop %v986
    %v989 = vmul.f32 1.0, %v988
    %v990 = vrcp.pop %v987
    %v991 = vmul.f32 1.0, %v990
    %v992 = vmul.f32 %v104, %v989
    %v993 = vmul.f32 %v107, %v991
    %996 = vrot.lane.b32.xlu0 %v992, 96
    %v997 = vpop.permute.xlu0 %996
    %998 = vrot.lane.b32.xlu0 %v993, 96
    %v999 = vpop.permute.xlu0 %998
    %v1002 = vmul.f32 %v978, %v997
    %v1003 = vmul.f32 %v979, %v999
    %v1004 = vpack.c.bf16 %v1003, %v1002
    %v1005 = vld [vmem:[%s4] sm:$0xf]
    %v1006 = vld [vmem:[%s4 + $0x4] sm:$0xf]
    %v1007 = vld [vmem:[%s4 + $0x8] sm:$0xf]
    %v1008 = vld [vmem:[%s4 + $0xc] sm:$0xf]
    %v1013 = vunpack.c.l.b16 %v1005
    %v1014 = vunpack.c.l.b16 %v1006
    %v1015 = vunpack.c.l.b16 %v1007
    %v1016 = vunpack.c.l.b16 %v1008
    %v1017 = vpack.c.b16 %v1014, %v1013
    %v1018 = vpack.c.b16 %v1016, %v1015
    %v1022 = vsel %vm233, %v1004, 0
    %1024 = vmatprep.subr.bf16.mxu0 0
    %1025 = vmatpush1.bf16.msra.mxu0 %v1017
    %1026 = vmatprep.subr.bf16.mxu0 0
    %1027 = vmatpush1.bf16.msra.mxu0 %v1018
    %1028 = vmatprep.subr.bf16.mxu0 0
    %1029 = vmatpush1.bf16.msra.mxu0 0
    %1030 = vmatprep.subr.bf16.mxu0 0
    %1031 = vmatpush1.bf16.msra.mxu0 0
    %1032 = vmatprep.subr.bf16.mxu0 0
    %1033 = vmatpush1.bf16.msra.mxu0 0
    %1034 = vmatprep.subr.bf16.mxu0 0
    %1035 = vmatpush1.bf16.msra.mxu0 0
    %1036 = vmatprep.subr.bf16.mxu0 0
    %1037 = vmatpush1.bf16.msra.mxu0 0
    %1038 = vmatprep.subr.bf16.mxu0 0
    %1039 = vmatpush1.bf16.msra.mxu0 0
    %1040 = vmatprep.subr.bf16.mxu0 0
    %1041 = vmatpush1.bf16.msra.mxu0 0
    %1042 = vmatprep.subr.bf16.mxu0 0
    %1043 = vmatpush1.bf16.msra.mxu0 0
    %1044 = vmatprep.subr.bf16.mxu0 0
    %1045 = vmatpush1.bf16.msra.mxu0 0
    %1046 = vmatprep.subr.bf16.mxu0 0
    %1047 = vmatpush1.bf16.msra.mxu0 0
    %1048 = vmatprep.subr.bf16.mxu0 0
    %1049 = vmatpush1.bf16.msra.mxu0 0
    %1050 = vmatprep.subr.bf16.mxu0 0
    %1051 = vmatpush1.bf16.msra.mxu0 0
    %1052 = vmatprep.subr.bf16.mxu0 0
    %1053 = vmatpush1.bf16.msra.mxu0 0
    %1054 = vmatprep.subr.bf16.mxu0 0
    %1055 = vmatpush1.bf16.msra.mxu0 0
    %1056 = vmatprep.mubr.bf16.mxu0 0
    %1057 = vmatmul.mubr.bf16.gmra.mrb[0].mxu0 %v1022
    %v1058 = vpop.f32.mrb[0].mxu0
    %v1059 = vadd.f32 %v25, %v1058
    %v1060 = vpop.f32.mrb[0].mxu0
    %v1061 = vpop.f32.mrb[0].mxu0
    %v1062 = vadd.f32 %v26, %v1061
    %v1063 = vpop.f32.mrb[0].mxu0
    %1064 = vdwg.mxu0
    %1065 = vst.msk [vmem:[#allocation2] sm:$0xff] %vm32, %v1059
    %1066 = vst.msk [vmem:[#allocation2 + $0x8] sm:$0xff] %vm32, %v1062
    // Predicated region
    $region26: #{tpu_custom_call.1} parent=1 // pred_check
      _
    $region27: #{tpu_custom_call.1} parent=1 // pred_check_branch
      %1068 = sbr.rel (0) target = $region29
    $region28: #{tpu_custom_call.1} parent=1 // pred_region
      %s1070 = ssub.s32 256, 256
      %1071 = vsyncadd [#allocation3], %s1070
      %s1072 = sshll.u32 [#allocation2], 4
      %s1073 = int_to_ptr.vmem [resolvable:$true] %s1072
      %1078 = dma.vmem_to_hbm [thread:$0]  %s1073, 256, %s6, [#allocation3], 128, 128, 8
    $region29: #{tpu_custom_call.1} parent=1 // pred_fallthru
      _
    // Predicated region
    $region30: #{tpu_custom_call.1} parent=1 // pred_check
      _
    $region31: #{tpu_custom_call.1} parent=1 // pred_check_branch
      %1080 = sbr.rel (0) target = $region33
    $region32: #{tpu_custom_call.1} parent=1 // pred_region
      %1081 = dma.done [#allocation3], 256
    $region33: #{tpu_custom_call.1} parent=1 // pred_fallthru
      _
    %1082 = vsyncpa [#allocation3], 1

</llo_original>
